<compile_context>
chip_gen: v7x
topology: tpu7x:2x2x1
jax: 0.10.0
libtpu: 0.0.40
codegen_flags: <defaults>
</compile_context>

<pallas_src>
import jax
import jax.numpy as jnp
from jax.experimental import pallas as pl
from jax.experimental.pallas import tpu as pltpu

EPS = 1e-5


# ---------------------------------------------------------------- helpers ---
def _toeplitz_weights(w, W):
    """torch (Cout, Cin, 3, 3) -> (3, W*Cin, W*Cout).

    kx and Cin fold into the contraction; W-direction zero padding folds into
    the block-Toeplitz structure (missing taps stay zero)."""
    Cout, Cin = int(w.shape[0]), int(w.shape[1])
    wk = jnp.transpose(w, (2, 3, 1, 0)).astype(jnp.float32)   # (ky, kx, Cin, Cout)
    B = jnp.zeros((3, W * Cin, W * Cout), jnp.float32)
    for kx in range(3):
        for xo in range(W):
            xin = xo + kx - 1
            if 0 <= xin < W:
                B = B.at[:, xin * Cin:(xin + 1) * Cin,
                         xo * Cout:(xo + 1) * Cout].set(wk[:, kx])
    return B


# ---------------------------------------------------------------- wrapper ---
@jax.jit
def double_conv(x_nchw, w1, b1, g1, be1, w2, b2, g2, be2):
    """x_nchw: (N, Cin, H, W) f32; conv weights in PyTorch layout (Cout, Cin, 3, 3)."""
    # Conv biases intentionally unused: BN's batch-mean subtraction cancels a
    # per-channel constant bias exactly.
    del b1, b2
    x = jnp.transpose(x_nchw, (0, 2, 3, 1)).astype(jnp.float32)   # NHWC
    N, H, W, Cin = x.shape
    C = int(w1.shape[0])                 # Cout
    Hp = H + 2
    WC = W * C
    WCin = W * Cin
    inv_count = 1.0 / float(N * H * W)

    # ---- host-side prep (tiny; fuses into a couple of XLA producers) ----
    # TODO(synk): fold the transpose / H-pad / ky-gather into in-kernel DMA
    # once the input outgrows a few MB.
    xr = jnp.pad(x, ((0, 0), (1, 1), (0, 0), (0, 0))).reshape(N, Hp, WCin)
    xcat = jnp.concatenate(
        [xr[:, ky:ky + H, :].reshape(N * H, WCin) for ky in range(3)], axis=1)
    B1cat = _toeplitz_weights(w1, W).reshape(3 * WCin, WC)    # (3*W*Cin, W*C)
    B2 = _toeplitz_weights(w2, W)                             # (3, W*C, W*C)
    # lane (w*C + c) <-> channel c reduction / expansion 0/1 matrices
    lane_ch = jnp.tile(jnp.arange(C), W)
    R = (lane_ch[:, None] == jnp.arange(C)[None, :]).astype(jnp.float32)   # (WC, C)
    Rt = R.T                                                               # (C, WC)
    gb = jnp.stack([g1, be1, g2, be2]).astype(jnp.float32)                 # (4, C)

    # ---------------------------------------------------------- the kernel --
    def kernel(xcat_ref, b1_ref, b2_ref, r_ref, rt_ref, gb_ref, o_ref, hpad_ref):
        # -- conv1: one MXU matmul, M = N*H, K = 3*W*Cin (ky folded into K)
        acc1 = jnp.dot(xcat_ref[...], b1_ref[...],
                       preferred_element_type=jnp.float32)        # (N*H, WC) f32

        gb_v = gb_ref[...]
        r = r_ref[...]
        rt = rt_ref[...]

        def bn_scale_shift(acc, g_row, b_row):
            # per-lane sum / sumsq -> per-channel stats via tiny 0/1 matmul
            s = jnp.sum(acc, axis=0, keepdims=True)               # (1, WC)
            q = jnp.sum(acc * acc, axis=0, keepdims=True)         # (1, WC)
            ch = jnp.dot(jnp.concatenate([s, q], axis=0), r,
                         preferred_element_type=jnp.float32)      # (2, C)
            mean = ch[0:1] * inv_count
            # TODO(synk): Welford/shifted variance if |mean| >> std in production
            var = ch[1:2] * inv_count - mean * mean               # biased (training BN)
            scale = g_row * jax.lax.rsqrt(var + EPS)              # EUP rsqrt
            shift = b_row - mean * scale
            # expand per-channel scale/shift back to per-lane
            return jnp.dot(jnp.concatenate([scale, shift], axis=0), rt,
                           preferred_element_type=jnp.float32)    # (2, WC)

        # -- BN1 + ReLU (single FMA pass)
        ss1 = bn_scale_shift(acc1, gb_v[0:1], gb_v[1:2])
        h1 = jnp.maximum(acc1 * ss1[0:1, :] + ss1[1:2, :], 0.0)

        # -- stage into the H-halo-padded scratch (only halo rows zeroed;
        #    W-halo is folded into the Toeplitz weights)
        zrow = jnp.zeros((1, WC), jnp.float32)
        for n in range(N):
            hpad_ref[n, 0:1, :] = zrow
            hpad_ref[n, Hp - 1:Hp, :] = zrow
            hpad_ref[n, 1:1 + H, :] = h1[n * H:(n + 1) * H, :]

        # -- conv2: per-image 3-tap MXU matmul chain
        accs = []
        for n in range(N):
            a = jnp.dot(hpad_ref[n, 0:H, :], b2_ref[0],
                        preferred_element_type=jnp.float32)
            for ky in (1, 2):
                a = a + jnp.dot(hpad_ref[n, ky:ky + H, :], b2_ref[ky],
                                preferred_element_type=jnp.float32)
            accs.append(a)
        acc2 = jnp.concatenate(accs, axis=0)                      # (N*H, WC)

        # -- BN2 + ReLU, lane-dense final store
        ss2 = bn_scale_shift(acc2, gb_v[2:3], gb_v[3:4])
        o_ref[...] = jnp.maximum(acc2 * ss2[0:1, :] + ss2[1:2, :], 0.0)

    out = pl.pallas_call(
        kernel,
        out_shape=jax.ShapeDtypeStruct((N * H, WC), jnp.float32),
        scratch_shapes=[pltpu.VMEM((N, Hp, WC), jnp.float32)],
    )(xcat, B1cat, B2, R, Rt, gb)

    # back to NCHW (tiny; XLA fuses the reshape+transpose)
    return jnp.transpose(out.reshape(N, H, W, C), (0, 3, 1, 2))


# -------------------------------------------------------------- reference ---
def _reference(x_nchw, w1, b1, g1, be1, w2, b2, g2, be2):
    """Pure-JAX reference (NCHW lax.conv + bias, batch-stat BatchNorm, ReLU)."""
    def conv(x, w, b):
        y = jax.lax.conv_general_dilated(
            x, w, window_strides=(1, 1), padding=((1, 1), (1, 1)),
            dimension_numbers=("NCHW", "OIHW", "NCHW"),
            precision=jax.lax.Precision.HIGHEST)
        return y + b[None, :, None, None]

    def bn_relu(h, g, be):
        mu = jnp.mean(h, axis=(0, 2, 3), keepdims=True)
        var = jnp.mean((h - mu) ** 2, axis=(0, 2, 3), keepdims=True)
        hn = (h - mu) / jnp.sqrt(var + EPS)
        hn = hn * g[None, :, None, None] + be[None, :, None, None]
        return jnp.maximum(hn, 0.0)

    h = bn_relu(conv(x_nchw, w1, b1), g1, be1)
    return bn_relu(conv(h, w2, b2), g2, be2)


if __name__ == "__main__":
    N, Cin, Cout, H, W = 2, 4, 8, 16, 16

    key = jax.random.PRNGKey(0)
    k = jax.random.split(key, 9)
    x = jax.random.normal(k[0], (N, Cin, H, W), jnp.float32)
    w1 = 0.1 * jax.random.normal(k[1], (Cout, Cin, 3, 3), jnp.float32)
    b1 = 0.1 * jax.random.normal(k[2], (Cout,), jnp.float32)
    w2 = 0.1 * jax.random.normal(k[3], (Cout, Cout, 3, 3), jnp.float32)
    b2 = 0.1 * jax.random.normal(k[4], (Cout,), jnp.float32)
    g1 = 1.0 + 0.1 * jax.random.normal(k[5], (Cout,), jnp.float32)
    be1 = 0.1 * jax.random.normal(k[6], (Cout,), jnp.float32)
    g2 = 1.0 + 0.1 * jax.random.normal(k[7], (Cout,), jnp.float32)
    be2 = 0.1 * jax.random.normal(k[8], (Cout,), jnp.float32)

    out = double_conv(x, w1, b1, g1, be1, w2, b2, g2, be2)
    out = jax.block_until_ready(out)

    ref = _reference(x, w1, b1, g1, be1, w2, b2, g2, be2)
    assert out.shape == (N, Cout, H, W)
    err = float(jnp.max(jnp.abs(out - ref)))
    # tolerance leaves headroom for MXU default-precision f32 passes; genuine
    # structural bugs produce O(0.1-1) errors, far above this.
    assert jnp.allclose(out, ref, rtol=1e-2, atol=1e-2), err
    print("KERNEL_OK")
</pallas_src>

<mosaic_0001>
module attributes {stable_mosaic.version = 11 : i64} {
  func.func @kernel(%arg0: memref<32x192xf32, #tpu.memory_space<vmem>>, %arg1: memref<192x128xf32, #tpu.memory_space<vmem>>, %arg2: memref<3x128x128xf32, #tpu.memory_space<vmem>>, %arg3: memref<128x8xf32, #tpu.memory_space<vmem>>, %arg4: memref<8x128xf32, #tpu.memory_space<vmem>>, %arg5: memref<4x8xf32, #tpu.memory_space<vmem>>, %arg6: memref<32x128xf32, #tpu.memory_space<vmem>>, %arg7: memref<2x18x128xf32, #tpu.memory_space<vmem>>) attributes {dimension_semantics = [], scalar_prefetch = 0 : i64, scratch_operands = 1 : i64, tpu.core_type = #tpu.core_type<tc>} {
    %c0 = arith.constant 0 : index
    %c0_0 = arith.constant 0 : index
    %0 = vector.load %arg0[%c0, %c0_0] : memref<32x192xf32, #tpu.memory_space<vmem>>, vector<32x192xf32>
    %c0_1 = arith.constant 0 : index
    %c0_2 = arith.constant 0 : index
    %1 = vector.load %arg1[%c0_1, %c0_2] : memref<192x128xf32, #tpu.memory_space<vmem>>, vector<192x128xf32>
    %cst = arith.constant dense<0.000000e+00> : vector<32x128xf32>
    %2 = tpu.matmul %0, %1, %cst {dimension_numbers = #tpu.dot_dimension_numbers<[1], [0], [0], [1], [0, 0, 1, 1], [], []>} : vector<32x192xf32>, vector<192x128xf32>, vector<32x128xf32> -> vector<32x128xf32>
    %c0_3 = arith.constant 0 : index
    %c0_4 = arith.constant 0 : index
    %3 = vector.load %arg5[%c0_3, %c0_4] : memref<4x8xf32, #tpu.memory_space<vmem>>, vector<4x8xf32>
    %c0_5 = arith.constant 0 : index
    %c0_6 = arith.constant 0 : index
    %4 = vector.load %arg3[%c0_5, %c0_6] : memref<128x8xf32, #tpu.memory_space<vmem>>, vector<128x8xf32>
    %c0_7 = arith.constant 0 : index
    %c0_8 = arith.constant 0 : index
    %5 = vector.load %arg4[%c0_7, %c0_8] : memref<8x128xf32, #tpu.memory_space<vmem>>, vector<8x128xf32>
    %6 = vector.extract_strided_slice %3 {offsets = [0, 0], sizes = [1, 8], strides = [1, 1]} : vector<4x8xf32> to vector<1x8xf32>
    %7 = vector.extract_strided_slice %3 {offsets = [1, 0], sizes = [1, 8], strides = [1, 1]} : vector<4x8xf32> to vector<1x8xf32>
    %cst_9 = arith.constant dense<0.000000e+00> : vector<128xf32>
    %8 = vector.multi_reduction <add>, %2, %cst_9 [0] : vector<32x128xf32> to vector<128xf32>
    %9 = vector.shape_cast %8 : vector<128xf32> to vector<1x128xf32>
    %10 = arith.mulf %2, %2 : vector<32x128xf32>
    %cst_10 = arith.constant dense<0.000000e+00> : vector<128xf32>
    %11 = vector.multi_reduction <add>, %10, %cst_10 [0] : vector<32x128xf32> to vector<128xf32>
    %12 = vector.shape_cast %11 : vector<128xf32> to vector<1x128xf32>
    %13 = tpu.concatenate %9, %12 in 0 : vector<1x128xf32>, vector<1x128xf32> -> vector<2x128xf32>
    %cst_11 = arith.constant dense<0.000000e+00> : vector<2x8xf32>
    %14 = tpu.matmul %13, %4, %cst_11 {dimension_numbers = #tpu.dot_dimension_numbers<[1], [0], [0], [1], [0, 0, 1, 1], [], []>} : vector<2x128xf32>, vector<128x8xf32>, vector<2x8xf32> -> vector<2x8xf32>
    %15 = vector.extract_strided_slice %14 {offsets = [0, 0], sizes = [1, 8], strides = [1, 1]} : vector<2x8xf32> to vector<1x8xf32>
    %cst_12 = arith.constant 0.001953125 : f32
    %16 = vector.broadcast %cst_12 : f32 to vector<1x8xf32>
    %17 = arith.mulf %15, %16 : vector<1x8xf32>
    %18 = vector.extract_strided_slice %14 {offsets = [1, 0], sizes = [1, 8], strides = [1, 1]} : vector<2x8xf32> to vector<1x8xf32>
    %cst_13 = arith.constant 0.001953125 : f32
    %19 = vector.broadcast %cst_13 : f32 to vector<1x8xf32>
    %20 = arith.mulf %18, %19 : vector<1x8xf32>
    %21 = arith.mulf %17, %17 : vector<1x8xf32>
    %22 = arith.subf %20, %21 : vector<1x8xf32>
    %cst_14 = arith.constant 9.99999974E-6 : f32
    %23 = vector.broadcast %cst_14 : f32 to vector<1x8xf32>
    %24 = arith.addf %22, %23 : vector<1x8xf32>
    %25 = math.rsqrt %24 : vector<1x8xf32>
    %26 = arith.mulf %6, %25 : vector<1x8xf32>
    %27 = arith.mulf %17, %26 : vector<1x8xf32>
    %28 = arith.subf %7, %27 : vector<1x8xf32>
    %29 = tpu.concatenate %26, %28 in 0 : vector<1x8xf32>, vector<1x8xf32> -> vector<2x8xf32>
    %cst_15 = arith.constant dense<0.000000e+00> : vector<2x128xf32>
    %30 = tpu.matmul %29, %5, %cst_15 {dimension_numbers = #tpu.dot_dimension_numbers<[1], [0], [0], [1], [0, 0, 1, 1], [], []>} : vector<2x8xf32>, vector<8x128xf32>, vector<2x128xf32> -> vector<2x128xf32>
    %31 = vector.extract_strided_slice %30 {offsets = [0, 0], sizes = [1, 128], strides = [1, 1]} : vector<2x128xf32> to vector<1x128xf32>
    %32 = vector.broadcast %31 : vector<1x128xf32> to vector<32x128xf32>
    %33 = arith.mulf %2, %32 : vector<32x128xf32>
    %34 = vector.extract_strided_slice %30 {offsets = [1, 0], sizes = [1, 128], strides = [1, 1]} : vector<2x128xf32> to vector<1x128xf32>
    %35 = vector.broadcast %34 : vector<1x128xf32> to vector<32x128xf32>
    %36 = arith.addf %33, %35 : vector<32x128xf32>
    %cst_16 = arith.constant 0.000000e+00 : f32
    %37 = vector.broadcast %cst_16 : f32 to vector<32x128xf32>
    %38 = arith.maximumf %36, %37 : vector<32x128xf32>
    %cst_17 = arith.constant 0.000000e+00 : f32
    %39 = vector.broadcast %cst_17 : f32 to vector<1x128xf32>
    %c0_18 = arith.constant 0 : index
    %c0_19 = arith.constant 0 : index
    %c0_20 = arith.constant 0 : index
    %40 = vector.load %arg7[%c0_18, %c0_19, %c0_20] : memref<2x18x128xf32, #tpu.memory_space<vmem>>, vector<1x1x128xf32>
    %41 = vector.shape_cast %40 : vector<1x1x128xf32> to vector<1x128xf32>
    %42 = vector.shape_cast %39 : vector<1x128xf32> to vector<1x1x128xf32>
    tpu.vector_store %arg7[%c0_18, %c0_19, %c0_20], %42 {strides = array<i32>} : memref<2x18x128xf32, #tpu.memory_space<vmem>>, vector<1x1x128xf32>,
    %c0_21 = arith.constant 0 : index
    %c17 = arith.constant 17 : index
    %c0_22 = arith.constant 0 : index
    %43 = vector.load %arg7[%c0_21, %c17, %c0_22] : memref<2x18x128xf32, #tpu.memory_space<vmem>>, vector<1x1x128xf32>
    %44 = vector.shape_cast %43 : vector<1x1x128xf32> to vector<1x128xf32>
    %45 = vector.shape_cast %39 : vector<1x128xf32> to vector<1x1x128xf32>
    tpu.vector_store %arg7[%c0_21, %c17, %c0_22], %45 {strides = array<i32>} : memref<2x18x128xf32, #tpu.memory_space<vmem>>, vector<1x1x128xf32>,
    %46 = vector.extract_strided_slice %38 {offsets = [0, 0], sizes = [16, 128], strides = [1, 1]} : vector<32x128xf32> to vector<16x128xf32>
    %c0_23 = arith.constant 0 : index
    %c1 = arith.constant 1 : index
    %c0_24 = arith.constant 0 : index
    %47 = vector.load %arg7[%c0_23, %c1, %c0_24] : memref<2x18x128xf32, #tpu.memory_space<vmem>>, vector<1x16x128xf32>
    %48 = vector.shape_cast %47 : vector<1x16x128xf32> to vector<16x128xf32>
    %49 = vector.shape_cast %46 : vector<16x128xf32> to vector<1x16x128xf32>
    tpu.vector_store %arg7[%c0_23, %c1, %c0_24], %49 {strides = array<i32>} : memref<2x18x128xf32, #tpu.memory_space<vmem>>, vector<1x16x128xf32>,
    %c1_25 = arith.constant 1 : index
    %c0_26 = arith.constant 0 : index
    %c0_27 = arith.constant 0 : index
    %50 = vector.load %arg7[%c1_25, %c0_26, %c0_27] : memref<2x18x128xf32, #tpu.memory_space<vmem>>, vector<1x1x128xf32>
    %51 = vector.shape_cast %50 : vector<1x1x128xf32> to vector<1x128xf32>
    %52 = vector.shape_cast %39 : vector<1x128xf32> to vector<1x1x128xf32>
    tpu.vector_store %arg7[%c1_25, %c0_26, %c0_27], %52 {strides = array<i32>} : memref<2x18x128xf32, #tpu.memory_space<vmem>>, vector<1x1x128xf32>,
    %c1_28 = arith.constant 1 : index
    %c17_29 = arith.constant 17 : index
    %c0_30 = arith.constant 0 : index
    %53 = vector.load %arg7[%c1_28, %c17_29, %c0_30] : memref<2x18x128xf32, #tpu.memory_space<vmem>>, vector<1x1x128xf32>
    %54 = vector.shape_cast %53 : vector<1x1x128xf32> to vector<1x128xf32>
    %55 = vector.shape_cast %39 : vector<1x128xf32> to vector<1x1x128xf32>
    tpu.vector_store %arg7[%c1_28, %c17_29, %c0_30], %55 {strides = array<i32>} : memref<2x18x128xf32, #tpu.memory_space<vmem>>, vector<1x1x128xf32>,
    %56 = vector.extract_strided_slice %38 {offsets = [16, 0], sizes = [16, 128], strides = [1, 1]} : vector<32x128xf32> to vector<16x128xf32>
    %c1_31 = arith.constant 1 : index
    %c1_32 = arith.constant 1 : index
    %c0_33 = arith.constant 0 : index
    %57 = vector.load %arg7[%c1_31, %c1_32, %c0_33] : memref<2x18x128xf32, #tpu.memory_space<vmem>>, vector<1x16x128xf32>
    %58 = vector.shape_cast %57 : vector<1x16x128xf32> to vector<16x128xf32>
    %59 = vector.shape_cast %56 : vector<16x128xf32> to vector<1x16x128xf32>
    tpu.vector_store %arg7[%c1_31, %c1_32, %c0_33], %59 {strides = array<i32>} : memref<2x18x128xf32, #tpu.memory_space<vmem>>, vector<1x16x128xf32>,
    %c0_34 = arith.constant 0 : index
    %c0_35 = arith.constant 0 : index
    %c0_36 = arith.constant 0 : index
    %60 = vector.load %arg7[%c0_34, %c0_35, %c0_36] : memref<2x18x128xf32, #tpu.memory_space<vmem>>, vector<1x16x128xf32>
    %61 = vector.shape_cast %60 : vector<1x16x128xf32> to vector<16x128xf32>
    %c0_37 = arith.constant 0 : index
    %c0_38 = arith.constant 0 : index
    %c0_39 = arith.constant 0 : index
    %62 = vector.load %arg2[%c0_37, %c0_38, %c0_39] : memref<3x128x128xf32, #tpu.memory_space<vmem>>, vector<1x128x128xf32>
    %63 = vector.shape_cast %62 : vector<1x128x128xf32> to vector<128x128xf32>
    %cst_40 = arith.constant dense<0.000000e+00> : vector<16x128xf32>
    %64 = tpu.matmul %61, %63, %cst_40 {dimension_numbers = #tpu.dot_dimension_numbers<[1], [0], [0], [1], [0, 0, 1, 1], [], []>} : vector<16x128xf32>, vector<128x128xf32>, vector<16x128xf32> -> vector<16x128xf32>
    %c0_41 = arith.constant 0 : index
    %c1_42 = arith.constant 1 : index
    %c0_43 = arith.constant 0 : index
    %65 = vector.load %arg7[%c0_41, %c1_42, %c0_43] : memref<2x18x128xf32, #tpu.memory_space<vmem>>, vector<1x16x128xf32>
    %66 = vector.shape_cast %65 : vector<1x16x128xf32> to vector<16x128xf32>
    %c1_44 = arith.constant 1 : index
    %c0_45 = arith.constant 0 : index
    %c0_46 = arith.constant 0 : index
    %67 = vector.load %arg2[%c1_44, %c0_45, %c0_46] : memref<3x128x128xf32, #tpu.memory_space<vmem>>, vector<1x128x128xf32>
    %68 = vector.shape_cast %67 : vector<1x128x128xf32> to vector<128x128xf32>
    %cst_47 = arith.constant dense<0.000000e+00> : vector<16x128xf32>
    %69 = tpu.matmul %66, %68, %cst_47 {dimension_numbers = #tpu.dot_dimension_numbers<[1], [0], [0], [1], [0, 0, 1, 1], [], []>} : vector<16x128xf32>, vector<128x128xf32>, vector<16x128xf32> -> vector<16x128xf32>
    %70 = arith.addf %64, %69 : vector<16x128xf32>
    %c0_48 = arith.constant 0 : index
    %c2 = arith.constant 2 : index
    %c0_49 = arith.constant 0 : index
    %71 = vector.load %arg7[%c0_48, %c2, %c0_49] : memref<2x18x128xf32, #tpu.memory_space<vmem>>, vector<1x16x128xf32>
    %72 = vector.shape_cast %71 : vector<1x16x128xf32> to vector<16x128xf32>
    %c2_50 = arith.constant 2 : index
    %c0_51 = arith.constant 0 : index
    %c0_52 = arith.constant 0 : index
    %73 = vector.load %arg2[%c2_50, %c0_51, %c0_52] : memref<3x128x128xf32, #tpu.memory_space<vmem>>, vector<1x128x128xf32>
    %74 = vector.shape_cast %73 : vector<1x128x128xf32> to vector<128x128xf32>
    %cst_53 = arith.constant dense<0.000000e+00> : vector<16x128xf32>
    %75 = tpu.matmul %72, %74, %cst_53 {dimension_numbers = #tpu.dot_dimension_numbers<[1], [0], [0], [1], [0, 0, 1, 1], [], []>} : vector<16x128xf32>, vector<128x128xf32>, vector<16x128xf32> -> vector<16x128xf32>
    %76 = arith.addf %70, %75 : vector<16x128xf32>
    %c1_54 = arith.constant 1 : index
    %c0_55 = arith.constant 0 : index
    %c0_56 = arith.constant 0 : index
    %77 = vector.load %arg7[%c1_54, %c0_55, %c0_56] : memref<2x18x128xf32, #tpu.memory_space<vmem>>, vector<1x16x128xf32>
    %78 = vector.shape_cast %77 : vector<1x16x128xf32> to vector<16x128xf32>
    %c0_57 = arith.constant 0 : index
    %c0_58 = arith.constant 0 : index
    %c0_59 = arith.constant 0 : index
    %79 = vector.load %arg2[%c0_57, %c0_58, %c0_59] : memref<3x128x128xf32, #tpu.memory_space<vmem>>, vector<1x128x128xf32>
    %80 = vector.shape_cast %79 : vector<1x128x128xf32> to vector<128x128xf32>
    %cst_60 = arith.constant dense<0.000000e+00> : vector<16x128xf32>
    %81 = tpu.matmul %78, %80, %cst_60 {dimension_numbers = #tpu.dot_dimension_numbers<[1], [0], [0], [1], [0, 0, 1, 1], [], []>} : vector<16x128xf32>, vector<128x128xf32>, vector<16x128xf32> -> vector<16x128xf32>
    %c1_61 = arith.constant 1 : index
    %c1_62 = arith.constant 1 : index
    %c0_63 = arith.constant 0 : index
    %82 = vector.load %arg7[%c1_61, %c1_62, %c0_63] : memref<2x18x128xf32, #tpu.memory_space<vmem>>, vector<1x16x128xf32>
    %83 = vector.shape_cast %82 : vector<1x16x128xf32> to vector<16x128xf32>
    %c1_64 = arith.constant 1 : index
    %c0_65 = arith.constant 0 : index
    %c0_66 = arith.constant 0 : index
    %84 = vector.load %arg2[%c1_64, %c0_65, %c0_66] : memref<3x128x128xf32, #tpu.memory_space<vmem>>, vector<1x128x128xf32>
    %85 = vector.shape_cast %84 : vector<1x128x128xf32> to vector<128x128xf32>
    %cst_67 = arith.constant dense<0.000000e+00> : vector<16x128xf32>
    %86 = tpu.matmul %83, %85, %cst_67 {dimension_numbers = #tpu.dot_dimension_numbers<[1], [0], [0], [1], [0, 0, 1, 1], [], []>} : vector<16x128xf32>, vector<128x128xf32>, vector<16x128xf32> -> vector<16x128xf32>
    %87 = arith.addf %81, %86 : vector<16x128xf32>
    %c1_68 = arith.constant 1 : index
    %c2_69 = arith.constant 2 : index
    %c0_70 = arith.constant 0 : index
    %88 = vector.load %arg7[%c1_68, %c2_69, %c0_70] : memref<2x18x128xf32, #tpu.memory_space<vmem>>, vector<1x16x128xf32>
    %89 = vector.shape_cast %88 : vector<1x16x128xf32> to vector<16x128xf32>
    %c2_71 = arith.constant 2 : index
    %c0_72 = arith.constant 0 : index
    %c0_73 = arith.constant 0 : index
    %90 = vector.load %arg2[%c2_71, %c0_72, %c0_73] : memref<3x128x128xf32, #tpu.memory_space<vmem>>, vector<1x128x128xf32>
    %91 = vector.shape_cast %90 : vector<1x128x128xf32> to vector<128x128xf32>
    %cst_74 = arith.constant dense<0.000000e+00> : vector<16x128xf32>
    %92 = tpu.matmul %89, %91, %cst_74 {dimension_numbers = #tpu.dot_dimension_numbers<[1], [0], [0], [1], [0, 0, 1, 1], [], []>} : vector<16x128xf32>, vector<128x128xf32>, vector<16x128xf32> -> vector<16x128xf32>
    %93 = arith.addf %87, %92 : vector<16x128xf32>
    %94 = tpu.concatenate %76, %93 in 0 : vector<16x128xf32>, vector<16x128xf32> -> vector<32x128xf32>
    %95 = vector.extract_strided_slice %3 {offsets = [2, 0], sizes = [1, 8], strides = [1, 1]} : vector<4x8xf32> to vector<1x8xf32>
    %96 = vector.extract_strided_slice %3 {offsets = [3, 0], sizes = [1, 8], strides = [1, 1]} : vector<4x8xf32> to vector<1x8xf32>
    %cst_75 = arith.constant dense<0.000000e+00> : vector<128xf32>
    %97 = vector.multi_reduction <add>, %94, %cst_75 [0] : vector<32x128xf32> to vector<128xf32>
    %98 = vector.shape_cast %97 : vector<128xf32> to vector<1x128xf32>
    %99 = arith.mulf %94, %94 : vector<32x128xf32>
    %cst_76 = arith.constant dense<0.000000e+00> : vector<128xf32>
    %100 = vector.multi_reduction <add>, %99, %cst_76 [0] : vector<32x128xf32> to vector<128xf32>
    %101 = vector.shape_cast %100 : vector<128xf32> to vector<1x128xf32>
    %102 = tpu.concatenate %98, %101 in 0 : vector<1x128xf32>, vector<1x128xf32> -> vector<2x128xf32>
    %cst_77 = arith.constant dense<0.000000e+00> : vector<2x8xf32>
    %103 = tpu.matmul %102, %4, %cst_77 {dimension_numbers = #tpu.dot_dimension_numbers<[1], [0], [0], [1], [0, 0, 1, 1], [], []>} : vector<2x128xf32>, vector<128x8xf32>, vector<2x8xf32> -> vector<2x8xf32>
    %104 = vector.extract_strided_slice %103 {offsets = [0, 0], sizes = [1, 8], strides = [1, 1]} : vector<2x8xf32> to vector<1x8xf32>
    %cst_78 = arith.constant 0.001953125 : f32
    %105 = vector.broadcast %cst_78 : f32 to vector<1x8xf32>
    %106 = arith.mulf %104, %105 : vector<1x8xf32>
    %107 = vector.extract_strided_slice %103 {offsets = [1, 0], sizes = [1, 8], strides = [1, 1]} : vector<2x8xf32> to vector<1x8xf32>
    %cst_79 = arith.constant 0.001953125 : f32
    %108 = vector.broadcast %cst_79 : f32 to vector<1x8xf32>
    %109 = arith.mulf %107, %108 : vector<1x8xf32>
    %110 = arith.mulf %106, %106 : vector<1x8xf32>
    %111 = arith.subf %109, %110 : vector<1x8xf32>
    %cst_80 = arith.constant 9.99999974E-6 : f32
    %112 = vector.broadcast %cst_80 : f32 to vector<1x8xf32>
    %113 = arith.addf %111, %112 : vector<1x8xf32>
    %114 = math.rsqrt %113 : vector<1x8xf32>
    %115 = arith.mulf %95, %114 : vector<1x8xf32>
    %116 = arith.mulf %106, %115 : vector<1x8xf32>
    %117 = arith.subf %96, %116 : vector<1x8xf32>
    %118 = tpu.concatenate %115, %117 in 0 : vector<1x8xf32>, vector<1x8xf32> -> vector<2x8xf32>
    %cst_81 = arith.constant dense<0.000000e+00> : vector<2x128xf32>
    %119 = tpu.matmul %118, %5, %cst_81 {dimension_numbers = #tpu.dot_dimension_numbers<[1], [0], [0], [1], [0, 0, 1, 1], [], []>} : vector<2x8xf32>, vector<8x128xf32>, vector<2x128xf32> -> vector<2x128xf32>
    %120 = vector.extract_strided_slice %119 {offsets = [0, 0], sizes = [1, 128], strides = [1, 1]} : vector<2x128xf32> to vector<1x128xf32>
    %121 = vector.broadcast %120 : vector<1x128xf32> to vector<32x128xf32>
    %122 = arith.mulf %94, %121 : vector<32x128xf32>
    %123 = vector.extract_strided_slice %119 {offsets = [1, 0], sizes = [1, 128], strides = [1, 1]} : vector<2x128xf32> to vector<1x128xf32>
    %124 = vector.broadcast %123 : vector<1x128xf32> to vector<32x128xf32>
    %125 = arith.addf %122, %124 : vector<32x128xf32>
    %cst_82 = arith.constant 0.000000e+00 : f32
    %126 = vector.broadcast %cst_82 : f32 to vector<32x128xf32>
    %127 = arith.maximumf %125, %126 : vector<32x128xf32>
    %c0_83 = arith.constant 0 : index
    %c0_84 = arith.constant 0 : index
    %128 = vector.load %arg6[%c0_83, %c0_84] : memref<32x128xf32, #tpu.memory_space<vmem>>, vector<32x128xf32>
    tpu.vector_store %arg6[%c0_83, %c0_84], %127 {strides = array<i32>} : memref<32x128xf32, #tpu.memory_space<vmem>>, vector<32x128xf32>,
    return
  }
}

</mosaic_0001>

<llo_original>
// kernel: eq.8
$region0: #{eq.8}
  %s0 = inlined_call_operand.vmem [shape: s32[16,8], index: 0, kind: input, shape index: {}]
  %s1 = inlined_call_operand.vmem [shape: s32[128], index: 1, kind: output, shape index: {}]
  $region1: #{eq.8} parent=0
    #allocation0 [shape = 'u8[4096]{0}', space=vmem, size = 0x1000, scoped, tag = 'scoped mem for output reshape']
    %v2 = vld [vmem:[%s0] sm:$0x1]
    %vm3 = vcmask 64512
    %4 = vst.msk [vmem:[#allocation0] sm:$0x1] %vm3, %v2
    %s5 = scalar_lea.vmem %s0, 15
    %v6 = vld [vmem:[%s5] sm:$0x1]
    %7 = vrot.lane.b32.xlu0 %v6, 120
    %v8 = vpop.permute.xlu0 %7
    %vm9 = vcmask 1048512
    %10 = vst.msk [vmem:[#allocation0] sm:$0x1] %vm9, %v8
    %s11 = scalar_lea.vmem %s0, 14
    %v12 = vld [vmem:[%s11] sm:$0x1]
    %13 = vrot.lane.b32.xlu0 %v12, 112
    %v14 = vpop.permute.xlu0 %13
    %vm15 = vcmask 982912
    %16 = vst.msk [vmem:[#allocation0] sm:$0x1] %vm15, %v14
    %s17 = scalar_lea.vmem %s0, 13
    %v18 = vld [vmem:[%s17] sm:$0x1]
    %19 = vrot.lane.b32.xlu0 %v18, 104
    %v20 = vpop.permute.xlu0 %19
    %vm21 = vcmask 917312
    %22 = vst.msk [vmem:[#allocation0] sm:$0x1] %vm21, %v20
    %s23 = scalar_lea.vmem %s0, 12
    %v24 = vld [vmem:[%s23] sm:$0x1]
    %25 = vrot.lane.b32.xlu0 %v24, 96
    %v26 = vpop.permute.xlu0 %25
    %vm27 = vcmask 851712
    %28 = vst.msk [vmem:[#allocation0] sm:$0x1] %vm27, %v26
    %s29 = scalar_lea.vmem %s0, 11
    %v30 = vld [vmem:[%s29] sm:$0x1]
    %31 = vrot.lane.b32.xlu0 %v30, 88
    %v32 = vpop.permute.xlu0 %31
    %vm33 = vcmask 786112
    %34 = vst.msk [vmem:[#allocation0] sm:$0x1] %vm33, %v32
    %s35 = scalar_lea.vmem %s0, 10
    %v36 = vld [vmem:[%s35] sm:$0x1]
    %37 = vrot.lane.b32.xlu0 %v36, 80
    %v38 = vpop.permute.xlu0 %37
    %vm39 = vcmask 720512
    %40 = vst.msk [vmem:[#allocation0] sm:$0x1] %vm39, %v38
    %s41 = scalar_lea.vmem %s0, 9
    %v42 = vld [vmem:[%s41] sm:$0x1]
    %43 = vrot.lane.b32.xlu0 %v42, 72
    %v44 = vpop.permute.xlu0 %43
    %vm45 = vcmask 654912
    %46 = vst.msk [vmem:[#allocation0] sm:$0x1] %vm45, %v44
    %s47 = scalar_lea.vmem %s0, 8
    %v48 = vld [vmem:[%s47] sm:$0x1]
    %49 = vrot.lane.b32.xlu0 %v48, 64
    %v50 = vpop.permute.xlu0 %49
    %vm51 = vcmask 589312
    %52 = vst.msk [vmem:[#allocation0] sm:$0x1] %vm51, %v50
    %s53 = scalar_lea.vmem %s0, 7
    %v54 = vld [vmem:[%s53] sm:$0x1]
    %55 = vrot.lane.b32.xlu0 %v54, 56
    %v56 = vpop.permute.xlu0 %55
    %vm57 = vcmask 523712
    %58 = vst.msk [vmem:[#allocation0] sm:$0x1] %vm57, %v56
    %s59 = scalar_lea.vmem %s0, 6
    %v60 = vld [vmem:[%s59] sm:$0x1]
    %61 = vrot.lane.b32.xlu0 %v60, 48
    %v62 = vpop.permute.xlu0 %61
    %vm63 = vcmask 458112
    %64 = vst.msk [vmem:[#allocation0] sm:$0x1] %vm63, %v62
    %s65 = scalar_lea.vmem %s0, 5
    %v66 = vld [vmem:[%s65] sm:$0x1]
    %67 = vrot.lane.b32.xlu0 %v66, 40
    %v68 = vpop.permute.xlu0 %67
    %vm69 = vcmask 392512
    %70 = vst.msk [vmem:[#allocation0] sm:$0x1] %vm69, %v68
    %s71 = scalar_lea.vmem %s0, 4
    %v72 = vld [vmem:[%s71] sm:$0x1]
    %73 = vrot.lane.b32.xlu0 %v72, 32
    %v74 = vpop.permute.xlu0 %73
    %vm75 = vcmask 326912
    %76 = vst.msk [vmem:[#allocation0] sm:$0x1] %vm75, %v74
    %s77 = scalar_lea.vmem %s0, 3
    %v78 = vld [vmem:[%s77] sm:$0x1]
    %79 = vrot.lane.b32.xlu0 %v78, 24
    %v80 = vpop.permute.xlu0 %79
    %vm81 = vcmask 261312
    %82 = vst.msk [vmem:[#allocation0] sm:$0x1] %vm81, %v80
    %s83 = scalar_lea.vmem %s0, 2
    %v84 = vld [vmem:[%s83] sm:$0x1]
    %85 = vrot.lane.b32.xlu0 %v84, 16
    %v86 = vpop.permute.xlu0 %85
    %vm87 = vcmask 195712
    %88 = vst.msk [vmem:[#allocation0] sm:$0x1] %vm87, %v86
    %s89 = scalar_lea.vmem %s0, 1
    %v90 = vld [vmem:[%s89] sm:$0x1]
    %91 = vrot.lane.b32.xlu0 %v90, 8
    %v92 = vpop.permute.xlu0 %91
    %vm93 = vcmask 130112
    %94 = vst.msk [vmem:[#allocation0] sm:$0x1] %vm93, %v92
    %s96 = sshllo.u32 0, 1
    %v98 = vld [vmem:[#allocation0] sm:%s96]
    %s99 = sshllo.u32 0, 1
    %100 = vst [vmem:[%s1] sm:%s99] %v98

// kernel: double_conv.1
$region0: #{double_conv.1}
  #allocation0 [shape = 'u32[]', space=smem, size = 0x4, offset = 0x4, fixed_abs, tag = 'smem constant byte address 0x4 - core index']
  #allocation1 [shape = 'u32[144,128]{1,0:T(1,128)}', space=vmem, size = 0x12000, scoped, tag = 'internal scratch']
  #allocation2 [shape = 'f32[2,18,128]{2,1,0:T(8,128)}', space=vmem, size = 0x6000, scoped, tag = 'scratch operand']
  %s0 = inlined_call_operand.vmem [shape: f32[32,192], index: 0, kind: input, shape index: {}]
  %s1 = inlined_call_operand.vmem [shape: f32[192,128], index: 1, kind: input, shape index: {}]
  %s2 = inlined_call_operand.vmem [shape: f32[3,128,128], index: 2, kind: input, shape index: {}]
  %s3 = inlined_call_operand.vmem [shape: f32[128,8], index: 3, kind: input, shape index: {}]
  %s4 = inlined_call_operand.vmem [shape: f32[8,128], index: 4, kind: input, shape index: {}]
  %s5 = inlined_call_operand.vmem [shape: f32[4,8], index: 5, kind: input, shape index: {}]
  %s6 = inlined_call_operand.vmem [shape: f32[32,128], index: 6, kind: output, shape index: {}]
  %s7 = sld [smem:[#allocation0]]
  $region34: #{double_conv.1} parent=0
    _
  %s9 = ssub.s32 1, %s7
  %s10 = scalar_select 0, %s9, %s7
  // Predicated region
  $region2: #{double_conv.1} parent=0 // pred_check
    _
  $region3: #{double_conv.1} parent=0 // pred_check_branch
    %12 = sbr.rel (0) target = $region5
  $region4: #{double_conv.1} parent=0 // pred_region
    _
  $region5: #{double_conv.1} parent=0 // pred_fallthru
    _
  // Predicated region
  $region6: #{double_conv.1} parent=0 // pred_check
    _
  $region7: #{double_conv.1} parent=0 // pred_check_branch
    %14 = sbr.rel (0) target = $region9
  $region8: #{double_conv.1} parent=0 // pred_region
    _
  $region9: #{double_conv.1} parent=0 // pred_fallthru
    _
  // Predicated region
  $region10: #{double_conv.1} parent=0 // pred_check
    _
  $region11: #{double_conv.1} parent=0 // pred_check_branch
    %16 = sbr.rel (0) target = $region13
  $region12: #{double_conv.1} parent=0 // pred_region
    _
  $region13: #{double_conv.1} parent=0 // pred_fallthru
    _
  // Predicated region
  $region14: #{double_conv.1} parent=0 // pred_check
    _
  $region15: #{double_conv.1} parent=0 // pred_check_branch
    %18 = sbr.rel (0) target = $region17
  $region16: #{double_conv.1} parent=0 // pred_region
    _
  $region17: #{double_conv.1} parent=0 // pred_fallthru
    _
  // Predicated region
  $region18: #{double_conv.1} parent=0 // pred_check
    _
  $region19: #{double_conv.1} parent=0 // pred_check_branch
    %20 = sbr.rel (0) target = $region21
  $region20: #{double_conv.1} parent=0 // pred_region
    _
  $region21: #{double_conv.1} parent=0 // pred_fallthru
    _
  // Predicated region
  $region22: #{double_conv.1} parent=0 // pred_check
    _
  $region23: #{double_conv.1} parent=0 // pred_check_branch
    %22 = sbr.rel (0) target = $region25
  $region24: #{double_conv.1} parent=0 // pred_region
    _
  $region25: #{double_conv.1} parent=0 // pred_fallthru
    _
  %v23 = vld [vmem:[%s0] sm:$0xff]
  %v24 = vld [vmem:[%s0 + $0x8] sm:$0xff]
  %v25 = vld [vmem:[%s0 + $0x10] sm:$0xff]
  %v26 = vld [vmem:[%s0 + $0x18] sm:$0xff]
  %v27 = vld [vmem:[%s0 + $0x20] sm:$0xff]
  %v28 = vld [vmem:[%s0 + $0x28] sm:$0xff]
  %v29 = vld [vmem:[%s0 + $0x30] sm:$0xff]
  %v30 = vld [vmem:[%s0 + $0x38] sm:$0xff]
  %v31 = vld [vmem:[%s1] sm:$0xff]
  %v32 = vld [vmem:[%s1 + $0x8] sm:$0xff]
  %v33 = vld [vmem:[%s1 + $0x10] sm:$0xff]
  %v34 = vld [vmem:[%s1 + $0x18] sm:$0xff]
  %v35 = vld [vmem:[%s1 + $0x20] sm:$0xff]
  %v36 = vld [vmem:[%s1 + $0x28] sm:$0xff]
  %v37 = vld [vmem:[%s1 + $0x30] sm:$0xff]
  %v38 = vld [vmem:[%s1 + $0x38] sm:$0xff]
  %v39 = vld [vmem:[%s1 + $0x40] sm:$0xff]
  %v40 = vld [vmem:[%s1 + $0x48] sm:$0xff]
  %v41 = vld [vmem:[%s1 + $0x50] sm:$0xff]
  %v42 = vld [vmem:[%s1 + $0x58] sm:$0xff]
  %v43 = vld [vmem:[%s1 + $0x60] sm:$0xff]
  %v44 = vld [vmem:[%s1 + $0x68] sm:$0xff]
  %v45 = vld [vmem:[%s1 + $0x70] sm:$0xff]
  %v46 = vld [vmem:[%s1 + $0x78] sm:$0xff]
  %v47 = vld [vmem:[%s1 + $0x80] sm:$0xff]
  %v48 = vld [vmem:[%s1 + $0x88] sm:$0xff]
  %v49 = vld [vmem:[%s1 + $0x90] sm:$0xff]
  %v50 = vld [vmem:[%s1 + $0x98] sm:$0xff]
  %v51 = vld [vmem:[%s1 + $0xa0] sm:$0xff]
  %v52 = vld [vmem:[%s1 + $0xa8] sm:$0xff]
  %v53 = vld [vmem:[%s1 + $0xb0] sm:$0xff]
  %v54 = vld [vmem:[%s1 + $0xb8] sm:$0xff]
  %vm55 = vcmask 523264
  %v57 = vsel %vm55, %v24, 0
  %v60 = vsel %vm55, %v26, 0
  %v63 = vsel %vm55, %v28, 0
  %v66 = vsel %vm55, %v30, 0
  %68 = vmatprep.subr.mxu0 0.0
  %69 = vmatpush1.msra.mxu0 %v31
  %70 = vmatprep.subr.mxu0 0.0
  %71 = vmatpush1.msra.mxu0 %v32
  %72 = vmatprep.subr.mxu0 0.0
  %73 = vmatpush1.msra.mxu0 %v33
  %74 = vmatprep.subr.mxu0 0.0
  %75 = vmatpush1.msra.mxu0 %v34
  %76 = vmatprep.subr.mxu0 0.0
  %77 = vmatpush1.msra.mxu0 %v35
  %78 = vmatprep.subr.mxu0 0.0
  %79 = vmatpush1.msra.mxu0 %v36
  %80 = vmatprep.subr.mxu0 0.0
  %81 = vmatpush1.msra.mxu0 %v37
  %82 = vmatprep.subr.mxu0 0.0
  %83 = vmatpush1.msra.mxu0 %v38
  %84 = vmatprep.subr.mxu0 0.0
  %85 = vmatpush1.msra.mxu0 %v39
  %86 = vmatprep.subr.mxu0 0.0
  %87 = vmatpush1.msra.mxu0 %v40
  %88 = vmatprep.subr.mxu0 0.0
  %89 = vmatpush1.msra.mxu0 %v41
  %90 = vmatprep.subr.mxu0 0.0
  %91 = vmatpush1.msra.mxu0 %v42
  %92 = vmatprep.subr.mxu0 0.0
  %93 = vmatpush1.msra.mxu0 %v43
  %94 = vmatprep.subr.mxu0 0.0
  %95 = vmatpush1.msra.mxu0 %v44
  %96 = vmatprep.subr.mxu0 0.0
  %97 = vmatpush1.msra.mxu0 %v45
  %98 = vmatprep.subr.mxu0 0.0
  %99 = vmatpush1.msra.mxu0 %v46
  %100 = vmatprep.subr.mxu0 0.0
  %101 = vmatpush1.msra.mxu0 %v47
  %102 = vmatprep.subr.mxu0 0.0
  %103 = vmatpush1.msra.mxu0 %v48
  %104 = vmatprep.subr.mxu0 0.0
  %105 = vmatpush1.msra.mxu0 %v49
  %106 = vmatprep.subr.mxu0 0.0
  %107 = vmatpush1.msra.mxu0 %v50
  %108 = vmatprep.subr.mxu0 0.0
  %109 = vmatpush1.msra.mxu0 %v51
  %110 = vmatprep.subr.mxu0 0.0
  %111 = vmatpush1.msra.mxu0 %v52
  %112 = vmatprep.subr.mxu0 0.0
  %113 = vmatpush1.msra.mxu0 %v53
  %114 = vmatprep.subr.mxu0 0.0
  %115 = vmatpush1.msra.mxu0 %v54
  %116 = vmatprep.subr.mxu0 0.0
  %117 = vmatpush1.msra.mxu0 0.0
  %118 = vmatprep.subr.mxu0 0.0
  %119 = vmatpush1.msra.mxu0 0.0
  %120 = vmatprep.subr.mxu0 0.0
  %121 = vmatpush1.msra.mxu0 0.0
  %122 = vmatprep.subr.mxu0 0.0
  %123 = vmatpush1.msra.mxu0 0.0
  %124 = vmatprep.subr.mxu0 0.0
  %125 = vmatpush1.msra.mxu0 0.0
  %126 = vmatprep.subr.mxu0 0.0
  %127 = vmatpush1.msra.mxu0 0.0
  %128 = vmatprep.subr.mxu0 0.0
  %129 = vmatpush1.msra.mxu0 0.0
  %130 = vmatprep.subr.mxu0 0.0
  %131 = vmatpush1.msra.mxu0 0.0
  %132 = vmatprep.mubr.f32.mxu0 %v57
  %133 = vmatmul.mubr.f32.gmra.mrb[0].mxu0 %v23
  %v134 = vpop.f32.mrb[0].mxu0
  %v135 = vadd.f32 0.0, %v134
  %v136 = vpop.f32.mrb[0].mxu0
  %137 = vmatprep.mubr.f32.mxu0 %v60
  %138 = vmatmul.mubr.f32.gmra.mrb[0].mxu0 %v25
  %v139 = vpop.f32.mrb[0].mxu0
  %v140 = vadd.f32 0.0, %v139
  %v141 = vpop.f32.mrb[0].mxu0
  %142 = vmatprep.mubr.f32.mxu0 %v63
  %143 = vmatmul.mubr.f32.gmra.mrb[0].mxu0 %v27
  %v144 = vpop.f32.mrb[0].mxu0
  %v145 = vadd.f32 0.0, %v144
  %v146 = vpop.f32.mrb[0].mxu0
  %147 = vmatprep.mubr.f32.mxu0 %v66
  %148 = vmatmul.mubr.f32.gmra.mrb[0].mxu0 %v29
  %v149 = vpop.f32.mrb[0].mxu0
  %v150 = vadd.f32 0.0, %v149
  %v151 = vpop.f32.mrb[0].mxu0
  %152 = vdwg.mxu0
  %v153 = vld [vmem:[%s5] sm:$0xf]
  %v154 = vld [vmem:[%s3] sm:$0xff]
  %v155 = vld [vmem:[%s3 + $0x8] sm:$0xff]
  %v156 = vld [vmem:[%s3 + $0x10] sm:$0xff]
  %v157 = vld [vmem:[%s3 + $0x18] sm:$0xff]
  %v158 = vld [vmem:[%s3 + $0x20] sm:$0xff]
  %v159 = vld [vmem:[%s3 + $0x28] sm:$0xff]
  %v160 = vld [vmem:[%s3 + $0x30] sm:$0xff]
  %v161 = vld [vmem:[%s3 + $0x38] sm:$0xff]
  %v162 = vld [vmem:[%s3 + $0x40] sm:$0xff]
  %v163 = vld [vmem:[%s3 + $0x48] sm:$0xff]
  %v164 = vld [vmem:[%s3 + $0x50] sm:$0xff]
  %v165 = vld [vmem:[%s3 + $0x58] sm:$0xff]
  %v166 = vld [vmem:[%s3 + $0x60] sm:$0xff]
  %v167 = vld [vmem:[%s3 + $0x68] sm:$0xff]
  %v168 = vld [vmem:[%s3 + $0x70] sm:$0xff]
  %v169 = vld [vmem:[%s3 + $0x78] sm:$0xff]
  %v170 = vld [vmem:[%s4] sm:$0xff]
  %v171 = vadd.f32 %v135, %v140
  %v172 = vadd.f32 %v171, %v145
  %v173 = vadd.f32 %v172, %v150
  %v174 = vrot.slane %v173, 4
  %v175 = vadd.f32 %v173, %v174
  %v176 = vrot.slane %v175, 2
  %v177 = vadd.f32 %v175, %v176
  %v178 = vrot.slane %v177, 1
  %v179 = vadd.f32 %v177, %v178
  %v180 = vmul.f32 %v135, %v135
  %v181 = vmul.f32 %v140, %v140
  %v182 = vmul.f32 %v145, %v145
  %v183 = vmul.f32 %v150, %v150
  %v184 = vadd.f32 %v180, %v181
  %v185 = vadd.f32 %v184, %v182
  %v186 = vadd.f32 %v185, %v183
  %v187 = vrot.slane %v186, 4
  %v188 = vadd.f32 %v186, %v187
  %v189 = vrot.slane %v188, 2
  %v190 = vadd.f32 %v188, %v189
  %v191 = vrot.slane %v190, 1
  %v192 = vadd.f32 %v190, %v191
  %vm193 = vcmask 1040384
  %v194 = vsel %vm193, %v179, %v192
  %195 = vmatprep.subr.mxu0 0.0
  %196 = vmatpush1.msra.mxu0 %v154
  %197 = vmatprep.subr.mxu0 0.0
  %198 = vmatpush1.msra.mxu0 %v155
  %199 = vmatprep.subr.mxu0 0.0
  %200 = vmatpush1.msra.mxu0 %v156
  %201 = vmatprep.subr.mxu0 0.0
  %202 = vmatpush1.msra.mxu0 %v157
  %203 = vmatprep.subr.mxu0 0.0
  %204 = vmatpush1.msra.mxu0 %v158
  %205 = vmatprep.subr.mxu0 0.0
  %206 = vmatpush1.msra.mxu0 %v159
  %207 = vmatprep.subr.mxu0 0.0
  %208 = vmatpush1.msra.mxu0 %v160
  %209 = vmatprep.subr.mxu0 0.0
  %210 = vmatpush1.msra.mxu0 %v161
  %211 = vmatprep.subr.mxu0 0.0
  %212 = vmatpush1.msra.mxu0 %v162
  %213 = vmatprep.subr.mxu0 0.0
  %214 = vmatpush1.msra.mxu0 %v163
  %215 = vmatprep.subr.mxu0 0.0
  %216 = vmatpush1.msra.mxu0 %v164
  %217 = vmatprep.subr.mxu0 0.0
  %218 = vmatpush1.msra.mxu0 %v165
  %219 = vmatprep.subr.mxu0 0.0
  %220 = vmatpush1.msra.mxu0 %v166
  %221 = vmatprep.subr.mxu0 0.0
  %222 = vmatpush1.msra.mxu0 %v167
  %223 = vmatprep.subr.mxu0 0.0
  %224 = vmatpush1.msra.mxu0 %v168
  %225 = vmatprep.subr.mxu0 0.0
  %226 = vmatpush1.msra.mxu0 %v169
  %227 = vmatprep.subr.mxu0 0.0
  %228 = vmatpush1.msra.mxu0 0.0
  %229 = vmatprep.subr.mxu0 0.0
  %230 = vmatpush1.msra.mxu0 0.0
  %231 = vmatprep.subr.mxu0 0.0
  %232 = vmatpush1.msra.mxu0 0.0
  %233 = vmatprep.subr.mxu0 0.0
  %234 = vmatpush1.msra.mxu0 0.0
  %235 = vmatprep.subr.mxu0 0.0
  %236 = vmatpush1.msra.mxu0 0.0
  %237 = vmatprep.subr.mxu0 0.0
  %238 = vmatpush1.msra.mxu0 0.0
  %239 = vmatprep.subr.mxu0 0.0
  %240 = vmatpush1.msra.mxu0 0.0
  %241 = vmatprep.subr.mxu0 0.0
  %242 = vmatpush1.msra.mxu0 0.0
  %243 = vmatprep.subr.mxu0 0.0
  %244 = vmatpush1.msra.mxu0 0.0
  %245 = vmatprep.subr.mxu0 0.0
  %246 = vmatpush1.msra.mxu0 0.0
  %247 = vmatprep.subr.mxu0 0.0
  %248 = vmatpush1.msra.mxu0 0.0
  %249 = vmatprep.subr.mxu0 0.0
  %250 = vmatpush1.msra.mxu0 0.0
  %251 = vmatprep.subr.mxu0 0.0
  %252 = vmatpush1.msra.mxu0 0.0
  %253 = vmatprep.subr.mxu0 0.0
  %254 = vmatpush1.msra.mxu0 0.0
  %255 = vmatprep.subr.mxu0 0.0
  %256 = vmatpush1.msra.mxu0 0.0
  %257 = vmatprep.subr.mxu0 0.0
  %258 = vmatpush1.msra.mxu0 0.0
  %259 = vmatprep.mubr.f32.mxu0 0.0
  %260 = vmatmul.mubr.f32.gmra.mrb[0].mxu0 %v194
  %v261 = vpop.f32.mrb[0].mxu0
  %v262 = vadd.f32 0.0, %v261
  %v263 = vpop.f32.mrb[0].mxu0
  %264 = vdwg.mxu0
  %v265 = vmul.f32 %v262, 0.001953125
  %v266 = vmul.f32 %v265, %v265
  %v268 = vrot.slane %v266, 7
  %v270 = vsub.f32 %v265, %v268
  %v271 = vadd.f32 %v270, 1e-05
  %v272 = vrsqrt.pop %v271
  %v274 = vrot.slane %v272, 1
  %v276 = vmul.f32 %v153, %v274
  %v277 = vmul.f32 %v265, %v276
  %v279 = vrot.slane %v277, 7
  %v281 = vsub.f32 %v153, %v279
  %v282 = vsel %vm193, %v276, %v281
  %vm283 = vcmask 64512
  %v285 = vsel %vm283, %v282, 0
  %287 = vmatprep.subr.mxu0 0.0
  %288 = vmatpush1.msra.mxu0 %v170
  %289 = vmatprep.subr.mxu0 0.0
  %290 = vmatpush1.msra.mxu0 0.0
  %291 = vmatprep.subr.mxu0 0.0
  %292 = vmatpush1.msra.mxu0 0.0
  %293 = vmatprep.subr.mxu0 0.0
  %294 = vmatpush1.msra.mxu0 0.0
  %295 = vmatprep.subr.mxu0 0.0
  %296 = vmatpush1.msra.mxu0 0.0
  %297 = vmatprep.subr.mxu0 0.0
  %298 = vmatpush1.msra.mxu0 0.0
  %299 = vmatprep.subr.mxu0 0.0
  %300 = vmatpush1.msra.mxu0 0.0
  %301 = vmatprep.subr.mxu0 0.0
  %302 = vmatpush1.msra.mxu0 0.0
  %303 = vmatprep.subr.mxu0 0.0
  %304 = vmatpush1.msra.mxu0 0.0
  %305 = vmatprep.subr.mxu0 0.0
  %306 = vmatpush1.msra.mxu0 0.0
  %307 = vmatprep.subr.mxu0 0.0
  %308 = vmatpush1.msra.mxu0 0.0
  %309 = vmatprep.subr.mxu0 0.0
  %310 = vmatpush1.msra.mxu0 0.0
  %311 = vmatprep.subr.mxu0 0.0
  %312 = vmatpush1.msra.mxu0 0.0
  %313 = vmatprep.subr.mxu0 0.0
  %314 = vmatpush1.msra.mxu0 0.0
  %315 = vmatprep.subr.mxu0 0.0
  %316 = vmatpush1.msra.mxu0 0.0
  %317 = vmatprep.subr.mxu0 0.0
  %318 = vmatpush1.msra.mxu0 0.0
  %319 = vmatprep.subr.mxu0 0.0
  %320 = vmatpush1.msra.mxu0 0.0
  %321 = vmatprep.subr.mxu0 0.0
  %322 = vmatpush1.msra.mxu0 0.0
  %323 = vmatprep.subr.mxu0 0.0
  %324 = vmatpush1.msra.mxu0 0.0
  %325 = vmatprep.subr.mxu0 0.0
  %326 = vmatpush1.msra.mxu0 0.0
  %327 = vmatprep.subr.mxu0 0.0
  %328 = vmatpush1.msra.mxu0 0.0
  %329 = vmatprep.subr.mxu0 0.0
  %330 = vmatpush1.msra.mxu0 0.0
  %331 = vmatprep.subr.mxu0 0.0
  %332 = vmatpush1.msra.mxu0 0.0
  %333 = vmatprep.subr.mxu0 0.0
  %334 = vmatpush1.msra.mxu0 0.0
  %335 = vmatprep.subr.mxu0 0.0
  %336 = vmatpush1.msra.mxu0 0.0
  %337 = vmatprep.subr.mxu0 0.0
  %338 = vmatpush1.msra.mxu0 0.0
  %339 = vmatprep.subr.mxu0 0.0
  %340 = vmatpush1.msra.mxu0 0.0
  %341 = vmatprep.subr.mxu0 0.0
  %342 = vmatpush1.msra.mxu0 0.0
  %343 = vmatprep.subr.mxu0 0.0
  %344 = vmatpush1.msra.mxu0 0.0
  %345 = vmatprep.subr.mxu0 0.0
  %346 = vmatpush1.msra.mxu0 0.0
  %347 = vmatprep.subr.mxu0 0.0
  %348 = vmatpush1.msra.mxu0 0.0
  %349 = vmatprep.subr.mxu0 0.0
  %350 = vmatpush1.msra.mxu0 0.0
  %351 = vmatprep.mubr.f32.mxu0 0.0
  %352 = vmatmul.mubr.f32.gmra.mrb[0].mxu0 %v285
  %v353 = vpop.f32.mrb[0].mxu0
  %v354 = vadd.f32 0.0, %v353
  %v355 = vpop.f32.mrb[0].mxu0
  %356 = vdwg.mxu0
  %v357 = vlaneseq
  %v358 = vshrl.u32 %v357, 7
  %v359 = vsub.s32 0, %v358
  %v360 = vrot.slane %v354, %v359
  %v361 = vmul.f32 %v135, %v360
  %v362 = vmul.f32 %v140, %v360
  %v363 = vmul.f32 %v145, %v360
  %v364 = vmul.f32 %v150, %v360
  %v365 = vlaneseq
  %v366 = vshrl.u32 %v365, 7
  %v367 = vsub.s32 1, %v366
  %v368 = vrot.slane %v354, %v367
  %v369 = vadd.f32 %v361, %v368
  %v370 = vadd.f32 %v362, %v368
  %v371 = vadd.f32 %v363, %v368
  %v372 = vadd.f32 %v364, %v368
  %v373 = vmax.f32 %v369, 0.0
  %v374 = vmax.f32 %v370, 0.0
  %v375 = vmax.f32 %v371, 0.0
  %v376 = vmax.f32 %v372, 0.0
  %377 = vst [vmem:[#allocation2] sm:$0x1] 0.0
  %378 = vst [vmem:[#allocation2 + $0x11] sm:$0x1] 0.0
  %379 = vst [vmem:[#allocation2 + $0x1] sm:$0xff] %v373
  %380 = vst [vmem:[#allocation2 + $0x9] sm:$0xff] %v374
  %s381 = scalar_lea.vmem [#allocation2], 24
  %382 = vst [vmem:[%s381] sm:$0x1] 0.0
  %383 = vst [vmem:[%s381 + $0x11] sm:$0x1] 0.0
  %384 = vst [vmem:[%s381 + $0x1] sm:$0xff] %v375
  %385 = vst [vmem:[%s381 + $0x9] sm:$0xff] %v376
  %v386 = vld [vmem:[#allocation2] sm:$0xff]
  %v387 = vld [vmem:[#allocation2 + $0x8] sm:$0xff]
  %v388 = vld [vmem:[%s2] sm:$0xff]
  %v389 = vld [vmem:[%s2 + $0x8] sm:$0xff]
  %v390 = vld [vmem:[%s2 + $0x10] sm:$0xff]
  %v391 = vld [vmem:[%s2 + $0x18] sm:$0xff]
  %v392 = vld [vmem:[%s2 + $0x20] sm:$0xff]
  %v393 = vld [vmem:[%s2 + $0x28] sm:$0xff]
  %v394 = vld [vmem:[%s2 + $0x30] sm:$0xff]
  %v395 = vld [vmem:[%s2 + $0x38] sm:$0xff]
  %v396 = vld [vmem:[%s2 + $0x40] sm:$0xff]
  %v397 = vld [vmem:[%s2 + $0x48] sm:$0xff]
  %v398 = vld [vmem:[%s2 + $0x50] sm:$0xff]
  %v399 = vld [vmem:[%s2 + $0x58] sm:$0xff]
  %v400 = vld [vmem:[%s2 + $0x60] sm:$0xff]
  %v401 = vld [vmem:[%s2 + $0x68] sm:$0xff]
  %v402 = vld [vmem:[%s2 + $0x70] sm:$0xff]
  %v403 = vld [vmem:[%s2 + $0x78] sm:$0xff]
  %v404 = vld [vmem:[#allocation2 + $0x1] sm:$0xff]
  %v405 = vld [vmem:[#allocation2 + $0x9] sm:$0xff]
  %s406 = scalar_lea.vmem %s2, 128
  %v407 = vld [vmem:[%s406] sm:$0xff]
  %v408 = vld [vmem:[%s406 + $0x8] sm:$0xff]
  %v409 = vld [vmem:[%s406 + $0x10] sm:$0xff]
  %v410 = vld [vmem:[%s406 + $0x18] sm:$0xff]
  %v411 = vld [vmem:[%s406 + $0x20] sm:$0xff]
  %v412 = vld [vmem:[%s406 + $0x28] sm:$0xff]
  %v413 = vld [vmem:[%s406 + $0x30] sm:$0xff]
  %v414 = vld [vmem:[%s406 + $0x38] sm:$0xff]
  %v415 = vld [vmem:[%s406 + $0x40] sm:$0xff]
  %v416 = vld [vmem:[%s406 + $0x48] sm:$0xff]
  %v417 = vld [vmem:[%s406 + $0x50] sm:$0xff]
  %v418 = vld [vmem:[%s406 + $0x58] sm:$0xff]
  %v419 = vld [vmem:[%s406 + $0x60] sm:$0xff]
  %v420 = vld [vmem:[%s406 + $0x68] sm:$0xff]
  %v421 = vld [vmem:[%s406 + $0x70] sm:$0xff]
  %v422 = vld [vmem:[%s406 + $0x78] sm:$0xff]
  %423 = vmatprep.subr.mxu0 0.0
  %424 = vmatpush1.msra.mxu0 %v407
  %425 = vmatprep.subr.mxu0 0.0
  %426 = vmatpush1.msra.mxu0 %v408
  %427 = vmatprep.subr.mxu0 0.0
  %428 = vmatpush1.msra.mxu0 %v409
  %429 = vmatprep.subr.mxu0 0.0
  %430 = vmatpush1.msra.mxu0 %v410
  %431 = vmatprep.subr.mxu0 0.0
  %432 = vmatpush1.msra.mxu0 %v411
  %433 = vmatprep.subr.mxu0 0.0
  %434 = vmatpush1.msra.mxu0 %v412
  %435 = vmatprep.subr.mxu0 0.0
  %436 = vmatpush1.msra.mxu0 %v413
  %437 = vmatprep.subr.mxu0 0.0
  %438 = vmatpush1.msra.mxu0 %v414
  %439 = vmatprep.subr.mxu0 0.0
  %440 = vmatpush1.msra.mxu0 %v415
  %441 = vmatprep.subr.mxu0 0.0
  %442 = vmatpush1.msra.mxu0 %v416
  %443 = vmatprep.subr.mxu0 0.0
  %444 = vmatpush1.msra.mxu0 %v417
  %445 = vmatprep.subr.mxu0 0.0
  %446 = vmatpush1.msra.mxu0 %v418
  %447 = vmatprep.subr.mxu0 0.0
  %448 = vmatpush1.msra.mxu0 %v419
  %449 = vmatprep.subr.mxu0 0.0
  %450 = vmatpush1.msra.mxu0 %v420
  %451 = vmatprep.subr.mxu0 0.0
  %452 = vmatpush1.msra.mxu0 %v421
  %453 = vmatprep.subr.mxu0 0.0
  %454 = vmatpush1.msra.mxu0 %v422
  %455 = vmatprep.subr.mxu0 0.0
  %456 = vmatpush1.msra.mxu0 0.0
  %457 = vmatprep.subr.mxu0 0.0
  %458 = vmatpush1.msra.mxu0 0.0
  %459 = vmatprep.subr.mxu0 0.0
  %460 = vmatpush1.msra.mxu0 0.0
  %461 = vmatprep.subr.mxu0 0.0
  %462 = vmatpush1.msra.mxu0 0.0
  %463 = vmatprep.subr.mxu0 0.0
  %464 = vmatpush1.msra.mxu0 0.0
  %465 = vmatprep.subr.mxu0 0.0
  %466 = vmatpush1.msra.mxu0 0.0
  %467 = vmatprep.subr.mxu0 0.0
  %468 = vmatpush1.msra.mxu0 0.0
  %469 = vmatprep.subr.mxu0 0.0
  %470 = vmatpush1.msra.mxu0 0.0
  %471 = vmatprep.subr.mxu0 0.0
  %472 = vmatpush1.msra.mxu0 0.0
  %473 = vmatprep.subr.mxu0 0.0
  %474 = vmatpush1.msra.mxu0 0.0
  %475 = vmatprep.subr.mxu0 0.0
  %476 = vmatpush1.msra.mxu0 0.0
  %477 = vmatprep.subr.mxu0 0.0
  %478 = vmatpush1.msra.mxu0 0.0
  %479 = vmatprep.subr.mxu0 0.0
  %480 = vmatpush1.msra.mxu0 0.0
  %481 = vmatprep.subr.mxu0 0.0
  %482 = vmatpush1.msra.mxu0 0.0
  %483 = vmatprep.subr.mxu0 0.0
  %484 = vmatpush1.msra.mxu0 0.0
  %485 = vmatprep.subr.mxu0 0.0
  %486 = vmatpush1.msra.mxu0 0.0
  %487 = vmatprep.mubr.f32.mxu0 0.0
  %488 = vmatmul.mubr.f32.gmra.mrb[0].mxu0 %v404
  %v489 = vpop.f32.mrb[0].mxu0
  %v490 = vadd.f32 0.0, %v489
  %v491 = vpop.f32.mrb[0].mxu0
  %492 = vmatprep.mubr.f32.mxu0 0.0
  %493 = vmatmul.mubr.f32.gmra.mrb[0].mxu0 %v405
  %v494 = vpop.f32.mrb[0].mxu0
  %v495 = vadd.f32 0.0, %v494
  %v496 = vpop.f32.mrb[0].mxu0
  %497 = vdwg.mxu0
  %498 = vmatprep.subr.mxu0 0.0
  %499 = vmatpush1.msra.mxu0 %v388
  %500 = vmatprep.subr.mxu0 0.0
  %501 = vmatpush1.msra.mxu0 %v389
  %502 = vmatprep.subr.mxu0 0.0
  %503 = vmatpush1.msra.mxu0 %v390
  %504 = vmatprep.subr.mxu0 0.0
  %505 = vmatpush1.msra.mxu0 %v391
  %506 = vmatprep.subr.mxu0 0.0
  %507 = vmatpush1.msra.mxu0 %v392
  %508 = vmatprep.subr.mxu0 0.0
  %509 = vmatpush1.msra.mxu0 %v393
  %510 = vmatprep.subr.mxu0 0.0
  %511 = vmatpush1.msra.mxu0 %v394
  %512 = vmatprep.subr.mxu0 0.0
  %513 = vmatpush1.msra.mxu0 %v395
  %514 = vmatprep.subr.mxu0 0.0
  %515 = vmatpush1.msra.mxu0 %v396
  %516 = vmatprep.subr.mxu0 0.0
  %517 = vmatpush1.msra.mxu0 %v397
  %518 = vmatprep.subr.mxu0 0.0
  %519 = vmatpush1.msra.mxu0 %v398
  %520 = vmatprep.subr.mxu0 0.0
  %521 = vmatpush1.msra.mxu0 %v399
  %522 = vmatprep.subr.mxu0 0.0
  %523 = vmatpush1.msra.mxu0 %v400
  %524 = vmatprep.subr.mxu0 0.0
  %525 = vmatpush1.msra.mxu0 %v401
  %526 = vmatprep.subr.mxu0 0.0
  %527 = vmatpush1.msra.mxu0 %v402
  %528 = vmatprep.subr.mxu0 0.0
  %529 = vmatpush1.msra.mxu0 %v403
  %530 = vmatprep.subr.mxu0 0.0
  %531 = vmatpush1.msra.mxu0 0.0
  %532 = vmatprep.subr.mxu0 0.0
  %533 = vmatpush1.msra.mxu0 0.0
  %534 = vmatprep.subr.mxu0 0.0
  %535 = vmatpush1.msra.mxu0 0.0
  %536 = vmatprep.subr.mxu0 0.0
  %537 = vmatpush1.msra.mxu0 0.0
  %538 = vmatprep.subr.mxu0 0.0
  %539 = vmatpush1.msra.mxu0 0.0
  %540 = vmatprep.subr.mxu0 0.0
  %541 = vmatpush1.msra.mxu0 0.0
  %542 = vmatprep.subr.mxu0 0.0
  %543 = vmatpush1.msra.mxu0 0.0
  %544 = vmatprep.subr.mxu0 0.0
  %545 = vmatpush1.msra.mxu0 0.0
  %546 = vmatprep.subr.mxu0 0.0
  %547 = vmatpush1.msra.mxu0 0.0
  %548 = vmatprep.subr.mxu0 0.0
  %549 = vmatpush1.msra.mxu0 0.0
  %550 = vmatprep.subr.mxu0 0.0
  %551 = vmatpush1.msra.mxu0 0.0
  %552 = vmatprep.subr.mxu0 0.0
  %553 = vmatpush1.msra.mxu0 0.0
  %554 = vmatprep.subr.mxu0 0.0
  %555 = vmatpush1.msra.mxu0 0.0
  %556 = vmatprep.subr.mxu0 0.0
  %557 = vmatpush1.msra.mxu0 0.0
  %558 = vmatprep.subr.mxu0 0.0
  %559 = vmatpush1.msra.mxu0 0.0
  %560 = vmatprep.subr.mxu0 0.0
  %561 = vmatpush1.msra.mxu0 0.0
  %562 = vmatprep.mubr.f32.mxu0 0.0
  %563 = vmatmul.mubr.f32.gmra.mrb[0].mxu0 %v386
  %v564 = vpop.f32.mrb[0].mxu0
  %v565 = vadd.f32 %v490, %v564
  %v566 = vpop.f32.mrb[0].mxu0
  %567 = vmatprep.mubr.f32.mxu0 0.0
  %568 = vmatmul.mubr.f32.gmra.mrb[0].mxu0 %v387
  %v569 = vpop.f32.mrb[0].mxu0
  %v570 = vadd.f32 %v495, %v569
  %v571 = vpop.f32.mrb[0].mxu0
  %572 = vdwg.mxu0
  %v573 = vld [vmem:[#allocation2 + $0x2] sm:$0xff]
  %v574 = vld [vmem:[#allocation2 + $0xa] sm:$0xff]
  %s575 = scalar_lea.vmem %s2, 256
  %v576 = vld [vmem:[%s575] sm:$0xff]
  %v577 = vld [vmem:[%s575 + $0x8] sm:$0xff]
  %v578 = vld [vmem:[%s575 + $0x10] sm:$0xff]
  %v579 = vld [vmem:[%s575 + $0x18] sm:$0xff]
  %v580 = vld [vmem:[%s575 + $0x20] sm:$0xff]
  %v581 = vld [vmem:[%s575 + $0x28] sm:$0xff]
  %v582 = vld [vmem:[%s575 + $0x30] sm:$0xff]
  %v583 = vld [vmem:[%s575 + $0x38] sm:$0xff]
  %v584 = vld [vmem:[%s575 + $0x40] sm:$0xff]
  %v585 = vld [vmem:[%s575 + $0x48] sm:$0xff]
  %v586 = vld [vmem:[%s575 + $0x50] sm:$0xff]
  %v587 = vld [vmem:[%s575 + $0x58] sm:$0xff]
  %v588 = vld [vmem:[%s575 + $0x60] sm:$0xff]
  %v589 = vld [vmem:[%s575 + $0x68] sm:$0xff]
  %v590 = vld [vmem:[%s575 + $0x70] sm:$0xff]
  %v591 = vld [vmem:[%s575 + $0x78] sm:$0xff]
  %592 = vmatprep.subr.mxu0 0.0
  %593 = vmatpush1.msra.mxu0 %v576
  %594 = vmatprep.subr.mxu0 0.0
  %595 = vmatpush1.msra.mxu0 %v577
  %596 = vmatprep.subr.mxu0 0.0
  %597 = vmatpush1.msra.mxu0 %v578
  %598 = vmatprep.subr.mxu0 0.0
  %599 = vmatpush1.msra.mxu0 %v579
  %600 = vmatprep.subr.mxu0 0.0
  %601 = vmatpush1.msra.mxu0 %v580
  %602 = vmatprep.subr.mxu0 0.0
  %603 = vmatpush1.msra.mxu0 %v581
  %604 = vmatprep.subr.mxu0 0.0
  %605 = vmatpush1.msra.mxu0 %v582
  %606 = vmatprep.subr.mxu0 0.0
  %607 = vmatpush1.msra.mxu0 %v583
  %608 = vmatprep.subr.mxu0 0.0
  %609 = vmatpush1.msra.mxu0 %v584
  %610 = vmatprep.subr.mxu0 0.0
  %611 = vmatpush1.msra.mxu0 %v585
  %612 = vmatprep.subr.mxu0 0.0
  %613 = vmatpush1.msra.mxu0 %v586
  %614 = vmatprep.subr.mxu0 0.0
  %615 = vmatpush1.msra.mxu0 %v587
  %616 = vmatprep.subr.mxu0 0.0
  %617 = vmatpush1.msra.mxu0 %v588
  %618 = vmatprep.subr.mxu0 0.0
  %619 = vmatpush1.msra.mxu0 %v589
  %620 = vmatprep.subr.mxu0 0.0
  %621 = vmatpush1.msra.mxu0 %v590
  %622 = vmatprep.subr.mxu0 0.0
  %623 = vmatpush1.msra.mxu0 %v591
  %624 = vmatprep.subr.mxu0 0.0
  %625 = vmatpush1.msra.mxu0 0.0
  %626 = vmatprep.subr.mxu0 0.0
  %627 = vmatpush1.msra.mxu0 0.0
  %628 = vmatprep.subr.mxu0 0.0
  %629 = vmatpush1.msra.mxu0 0.0
  %630 = vmatprep.subr.mxu0 0.0
  %631 = vmatpush1.msra.mxu0 0.0
  %632 = vmatprep.subr.mxu0 0.0
  %633 = vmatpush1.msra.mxu0 0.0
  %634 = vmatprep.subr.mxu0 0.0
  %635 = vmatpush1.msra.mxu0 0.0
  %636 = vmatprep.subr.mxu0 0.0
  %637 = vmatpush1.msra.mxu0 0.0
  %638 = vmatprep.subr.mxu0 0.0
  %639 = vmatpush1.msra.mxu0 0.0
  %640 = vmatprep.subr.mxu0 0.0
  %641 = vmatpush1.msra.mxu0 0.0
  %642 = vmatprep.subr.mxu0 0.0
  %643 = vmatpush1.msra.mxu0 0.0
  %644 = vmatprep.subr.mxu0 0.0
  %645 = vmatpush1.msra.mxu0 0.0
  %646 = vmatprep.subr.mxu0 0.0
  %647 = vmatpush1.msra.mxu0 0.0
  %648 = vmatprep.subr.mxu0 0.0
  %649 = vmatpush1.msra.mxu0 0.0
  %650 = vmatprep.subr.mxu0 0.0
  %651 = vmatpush1.msra.mxu0 0.0
  %652 = vmatprep.subr.mxu0 0.0
  %653 = vmatpush1.msra.mxu0 0.0
  %654 = vmatprep.subr.mxu0 0.0
  %655 = vmatpush1.msra.mxu0 0.0
  %656 = vmatprep.mubr.f32.mxu0 0.0
  %657 = vmatmul.mubr.f32.gmra.mrb[0].mxu0 %v573
  %v658 = vpop.f32.mrb[0].mxu0
  %v659 = vadd.f32 0.0, %v658
  %v660 = vpop.f32.mrb[0].mxu0
  %661 = vmatprep.mubr.f32.mxu0 0.0
  %662 = vmatmul.mubr.f32.gmra.mrb[0].mxu0 %v574
  %v663 = vpop.f32.mrb[0].mxu0
  %v664 = vadd.f32 0.0, %v663
  %v665 = vpop.f32.mrb[0].mxu0
  %666 = vdwg.mxu0
  %v667 = vadd.f32 %v565, %v659
  %v668 = vadd.f32 %v570, %v664
  %v669 = vld [vmem:[%s381] sm:$0xff]
  %v670 = vld [vmem:[%s381 + $0x8] sm:$0xff]
  %v671 = vld [vmem:[%s381 + $0x1] sm:$0xff]
  %v672 = vld [vmem:[%s381 + $0x9] sm:$0xff]
  %673 = vmatprep.subr.mxu0 0.0
  %674 = vmatpush1.msra.mxu0 %v407
  %675 = vmatprep.subr.mxu0 0.0
  %676 = vmatpush1.msra.mxu0 %v408
  %677 = vmatprep.subr.mxu0 0.0
  %678 = vmatpush1.msra.mxu0 %v409
  %679 = vmatprep.subr.mxu0 0.0
  %680 = vmatpush1.msra.mxu0 %v410
  %681 = vmatprep.subr.mxu0 0.0
  %682 = vmatpush1.msra.mxu0 %v411
  %683 = vmatprep.subr.mxu0 0.0
  %684 = vmatpush1.msra.mxu0 %v412
  %685 = vmatprep.subr.mxu0 0.0
  %686 = vmatpush1.msra.mxu0 %v413
  %687 = vmatprep.subr.mxu0 0.0
  %688 = vmatpush1.msra.mxu0 %v414
  %689 = vmatprep.subr.mxu0 0.0
  %690 = vmatpush1.msra.mxu0 %v415
  %691 = vmatprep.subr.mxu0 0.0
  %692 = vmatpush1.msra.mxu0 %v416
  %693 = vmatprep.subr.mxu0 0.0
  %694 = vmatpush1.msra.mxu0 %v417
  %695 = vmatprep.subr.mxu0 0.0
  %696 = vmatpush1.msra.mxu0 %v418
  %697 = vmatprep.subr.mxu0 0.0
  %698 = vmatpush1.msra.mxu0 %v419
  %699 = vmatprep.subr.mxu0 0.0
  %700 = vmatpush1.msra.mxu0 %v420
  %701 = vmatprep.subr.mxu0 0.0
  %702 = vmatpush1.msra.mxu0 %v421
  %703 = vmatprep.subr.mxu0 0.0
  %704 = vmatpush1.msra.mxu0 %v422
  %705 = vmatprep.subr.mxu0 0.0
  %706 = vmatpush1.msra.mxu0 0.0
  %707 = vmatprep.subr.mxu0 0.0
  %708 = vmatpush1.msra.mxu0 0.0
  %709 = vmatprep.subr.mxu0 0.0
  %710 = vmatpush1.msra.mxu0 0.0
  %711 = vmatprep.subr.mxu0 0.0
  %712 = vmatpush1.msra.mxu0 0.0
  %713 = vmatprep.subr.mxu0 0.0
  %714 = vmatpush1.msra.mxu0 0.0
  %715 = vmatprep.subr.mxu0 0.0
  %716 = vmatpush1.msra.mxu0 0.0
  %717 = vmatprep.subr.mxu0 0.0
  %718 = vmatpush1.msra.mxu0 0.0
  %719 = vmatprep.subr.mxu0 0.0
  %720 = vmatpush1.msra.mxu0 0.0
  %721 = vmatprep.subr.mxu0 0.0
  %722 = vmatpush1.msra.mxu0 0.0
  %723 = vmatprep.subr.mxu0 0.0
  %724 = vmatpush1.msra.mxu0 0.0
  %725 = vmatprep.subr.mxu0 0.0
  %726 = vmatpush1.msra.mxu0 0.0
  %727 = vmatprep.subr.mxu0 0.0
  %728 = vmatpush1.msra.mxu0 0.0
  %729 = vmatprep.subr.mxu0 0.0
  %730 = vmatpush1.msra.mxu0 0.0
  %731 = vmatprep.subr.mxu0 0.0
  %732 = vmatpush1.msra.mxu0 0.0
  %733 = vmatprep.subr.mxu0 0.0
  %734 = vmatpush1.msra.mxu0 0.0
  %735 = vmatprep.subr.mxu0 0.0
  %736 = vmatpush1.msra.mxu0 0.0
  %737 = vmatprep.mubr.f32.mxu0 0.0
  %738 = vmatmul.mubr.f32.gmra.mrb[0].mxu0 %v671
  %v739 = vpop.f32.mrb[0].mxu0
  %v740 = vadd.f32 0.0, %v739
  %v741 = vpop.f32.mrb[0].mxu0
  %742 = vmatprep.mubr.f32.mxu0 0.0
  %743 = vmatmul.mubr.f32.gmra.mrb[0].mxu0 %v672
  %v744 = vpop.f32.mrb[0].mxu0
  %v745 = vadd.f32 0.0, %v744
  %v746 = vpop.f32.mrb[0].mxu0
  %747 = vdwg.mxu0
  %748 = vmatprep.subr.mxu0 0.0
  %749 = vmatpush1.msra.mxu0 %v388
  %750 = vmatprep.subr.mxu0 0.0
  %751 = vmatpush1.msra.mxu0 %v389
  %752 = vmatprep.subr.mxu0 0.0
  %753 = vmatpush1.msra.mxu0 %v390
  %754 = vmatprep.subr.mxu0 0.0
  %755 = vmatpush1.msra.mxu0 %v391
  %756 = vmatprep.subr.mxu0 0.0
  %757 = vmatpush1.msra.mxu0 %v392
  %758 = vmatprep.subr.mxu0 0.0
  %759 = vmatpush1.msra.mxu0 %v393
  %760 = vmatprep.subr.mxu0 0.0
  %761 = vmatpush1.msra.mxu0 %v394
  %762 = vmatprep.subr.mxu0 0.0
  %763 = vmatpush1.msra.mxu0 %v395
  %764 = vmatprep.subr.mxu0 0.0
  %765 = vmatpush1.msra.mxu0 %v396
  %766 = vmatprep.subr.mxu0 0.0
  %767 = vmatpush1.msra.mxu0 %v397
  %768 = vmatprep.subr.mxu0 0.0
  %769 = vmatpush1.msra.mxu0 %v398
  %770 = vmatprep.subr.mxu0 0.0
  %771 = vmatpush1.msra.mxu0 %v399
  %772 = vmatprep.subr.mxu0 0.0
  %773 = vmatpush1.msra.mxu0 %v400
  %774 = vmatprep.subr.mxu0 0.0
  %775 = vmatpush1.msra.mxu0 %v401
  %776 = vmatprep.subr.mxu0 0.0
  %777 = vmatpush1.msra.mxu0 %v402
  %778 = vmatprep.subr.mxu0 0.0
  %779 = vmatpush1.msra.mxu0 %v403
  %780 = vmatprep.subr.mxu0 0.0
  %781 = vmatpush1.msra.mxu0 0.0
  %782 = vmatprep.subr.mxu0 0.0
  %783 = vmatpush1.msra.mxu0 0.0
  %784 = vmatprep.subr.mxu0 0.0
  %785 = vmatpush1.msra.mxu0 0.0
  %786 = vmatprep.subr.mxu0 0.0
  %787 = vmatpush1.msra.mxu0 0.0
  %788 = vmatprep.subr.mxu0 0.0
  %789 = vmatpush1.msra.mxu0 0.0
  %790 = vmatprep.subr.mxu0 0.0
  %791 = vmatpush1.msra.mxu0 0.0
  %792 = vmatprep.subr.mxu0 0.0
  %793 = vmatpush1.msra.mxu0 0.0
  %794 = vmatprep.subr.mxu0 0.0
  %795 = vmatpush1.msra.mxu0 0.0
  %796 = vmatprep.subr.mxu0 0.0
  %797 = vmatpush1.msra.mxu0 0.0
  %798 = vmatprep.subr.mxu0 0.0
  %799 = vmatpush1.msra.mxu0 0.0
  %800 = vmatprep.subr.mxu0 0.0
  %801 = vmatpush1.msra.mxu0 0.0
  %802 = vmatprep.subr.mxu0 0.0
  %803 = vmatpush1.msra.mxu0 0.0
  %804 = vmatprep.subr.mxu0 0.0
  %805 = vmatpush1.msra.mxu0 0.0
  %806 = vmatprep.subr.mxu0 0.0
  %807 = vmatpush1.msra.mxu0 0.0
  %808 = vmatprep.subr.mxu0 0.0
  %809 = vmatpush1.msra.mxu0 0.0
  %810 = vmatprep.subr.mxu0 0.0
  %811 = vmatpush1.msra.mxu0 0.0
  %812 = vmatprep.mubr.f32.mxu0 0.0
  %813 = vmatmul.mubr.f32.gmra.mrb[0].mxu0 %v669
  %v814 = vpop.f32.mrb[0].mxu0
  %v815 = vadd.f32 %v740, %v814
  %v816 = vpop.f32.mrb[0].mxu0
  %817 = vmatprep.mubr.f32.mxu0 0.0
  %818 = vmatmul.mubr.f32.gmra.mrb[0].mxu0 %v670
  %v819 = vpop.f32.mrb[0].mxu0
  %v820 = vadd.f32 %v745, %v819
  %v821 = vpop.f32.mrb[0].mxu0
  %822 = vdwg.mxu0
  %v823 = vld [vmem:[%s381 + $0x2] sm:$0xff]
  %v824 = vld [vmem:[%s381 + $0xa] sm:$0xff]
  %825 = vmatprep.subr.mxu0 0.0
  %826 = vmatpush1.msra.mxu0 %v576
  %827 = vmatprep.subr.mxu0 0.0
  %828 = vmatpush1.msra.mxu0 %v577
  %829 = vmatprep.subr.mxu0 0.0
  %830 = vmatpush1.msra.mxu0 %v578
  %831 = vmatprep.subr.mxu0 0.0
  %832 = vmatpush1.msra.mxu0 %v579
  %833 = vmatprep.subr.mxu0 0.0
  %834 = vmatpush1.msra.mxu0 %v580
  %835 = vmatprep.subr.mxu0 0.0
  %836 = vmatpush1.msra.mxu0 %v581
  %837 = vmatprep.subr.mxu0 0.0
  %838 = vmatpush1.msra.mxu0 %v582
  %839 = vmatprep.subr.mxu0 0.0
  %840 = vmatpush1.msra.mxu0 %v583
  %841 = vmatprep.subr.mxu0 0.0
  %842 = vmatpush1.msra.mxu0 %v584
  %843 = vmatprep.subr.mxu0 0.0
  %844 = vmatpush1.msra.mxu0 %v585
  %845 = vmatprep.subr.mxu0 0.0
  %846 = vmatpush1.msra.mxu0 %v586
  %847 = vmatprep.subr.mxu0 0.0
  %848 = vmatpush1.msra.mxu0 %v587
  %849 = vmatprep.subr.mxu0 0.0
  %850 = vmatpush1.msra.mxu0 %v588
  %851 = vmatprep.subr.mxu0 0.0
  %852 = vmatpush1.msra.mxu0 %v589
  %853 = vmatprep.subr.mxu0 0.0
  %854 = vmatpush1.msra.mxu0 %v590
  %855 = vmatprep.subr.mxu0 0.0
  %856 = vmatpush1.msra.mxu0 %v591
  %857 = vmatprep.subr.mxu0 0.0
  %858 = vmatpush1.msra.mxu0 0.0
  %859 = vmatprep.subr.mxu0 0.0
  %860 = vmatpush1.msra.mxu0 0.0
  %861 = vmatprep.subr.mxu0 0.0
  %862 = vmatpush1.msra.mxu0 0.0
  %863 = vmatprep.subr.mxu0 0.0
  %864 = vmatpush1.msra.mxu0 0.0
  %865 = vmatprep.subr.mxu0 0.0
  %866 = vmatpush1.msra.mxu0 0.0
  %867 = vmatprep.subr.mxu0 0.0
  %868 = vmatpush1.msra.mxu0 0.0
  %869 = vmatprep.subr.mxu0 0.0
  %870 = vmatpush1.msra.mxu0 0.0
  %871 = vmatprep.subr.mxu0 0.0
  %872 = vmatpush1.msra.mxu0 0.0
  %873 = vmatprep.subr.mxu0 0.0
  %874 = vmatpush1.msra.mxu0 0.0
  %875 = vmatprep.subr.mxu0 0.0
  %876 = vmatpush1.msra.mxu0 0.0
  %877 = vmatprep.subr.mxu0 0.0
  %878 = vmatpush1.msra.mxu0 0.0
  %879 = vmatprep.subr.mxu0 0.0
  %880 = vmatpush1.msra.mxu0 0.0
  %881 = vmatprep.subr.mxu0 0.0
  %882 = vmatpush1.msra.mxu0 0.0
  %883 = vmatprep.subr.mxu0 0.0
  %884 = vmatpush1.msra.mxu0 0.0
  %885 = vmatprep.subr.mxu0 0.0
  %886 = vmatpush1.msra.mxu0 0.0
  %887 = vmatprep.subr.mxu0 0.0
  %888 = vmatpush1.msra.mxu0 0.0
  %889 = vmatprep.mubr.f32.mxu0 0.0
  %890 = vmatmul.mubr.f32.gmra.mrb[0].mxu0 %v823
  %v891 = vpop.f32.mrb[0].mxu0
  %v892 = vadd.f32 0.0, %v891
  %v893 = vpop.f32.mrb[0].mxu0
  %894 = vmatprep.mubr.f32.mxu0 0.0
  %895 = vmatmul.mubr.f32.gmra.mrb[0].mxu0 %v824
  %v896 = vpop.f32.mrb[0].mxu0
  %v897 = vadd.f32 0.0, %v896
  %v898 = vpop.f32.mrb[0].mxu0
  %899 = vdwg.mxu0
  %v900 = vadd.f32 %v815, %v892
  %v901 = vadd.f32 %v820, %v897
  %v902 = vadd.f32 %v667, %v668
  %v903 = vadd.f32 %v902, %v900
  %v904 = vadd.f32 %v903, %v901
  %v905 = vrot.slane %v904, 4
  %v906 = vadd.f32 %v904, %v905
  %v907 = vrot.slane %v906, 2
  %v908 = vadd.f32 %v906, %v907
  %v909 = vrot.slane %v908, 1
  %v910 = vadd.f32 %v908, %v909
  %v911 = vmul.f32 %v667, %v667
  %v912 = vmul.f32 %v668, %v668
  %v913 = vmul.f32 %v900, %v900
  %v914 = vmul.f32 %v901, %v901
  %v915 = vadd.f32 %v911, %v912
  %v916 = vadd.f32 %v915, %v913
  %v917 = vadd.f32 %v916, %v914
  %v918 = vrot.slane %v917, 4
  %v919 = vadd.f32 %v917, %v918
  %v920 = vrot.slane %v919, 2
  %v921 = vadd.f32 %v919, %v920
  %v922 = vrot.slane %v921, 1
  %v923 = vadd.f32 %v921, %v922
  %v924 = vsel %vm193, %v910, %v923
  %925 = vmatprep.subr.mxu0 0.0
  %926 = vmatpush1.msra.mxu0 %v154
  %927 = vmatprep.subr.mxu0 0.0
  %928 = vmatpush1.msra.mxu0 %v155
  %929 = vmatprep.subr.mxu0 0.0
  %930 = vmatpush1.msra.mxu0 %v156
  %931 = vmatprep.subr.mxu0 0.0
  %932 = vmatpush1.msra.mxu0 %v157
  %933 = vmatprep.subr.mxu0 0.0
  %934 = vmatpush1.msra.mxu0 %v158
  %935 = vmatprep.subr.mxu0 0.0
  %936 = vmatpush1.msra.mxu0 %v159
  %937 = vmatprep.subr.mxu0 0.0
  %938 = vmatpush1.msra.mxu0 %v160
  %939 = vmatprep.subr.mxu0 0.0
  %940 = vmatpush1.msra.mxu0 %v161
  %941 = vmatprep.subr.mxu0 0.0
  %942 = vmatpush1.msra.mxu0 %v162
  %943 = vmatprep.subr.mxu0 0.0
  %944 = vmatpush1.msra.mxu0 %v163
  %945 = vmatprep.subr.mxu0 0.0
  %946 = vmatpush1.msra.mxu0 %v164
  %947 = vmatprep.subr.mxu0 0.0
  %948 = vmatpush1.msra.mxu0 %v165
  %949 = vmatprep.subr.mxu0 0.0
  %950 = vmatpush1.msra.mxu0 %v166
  %951 = vmatprep.subr.mxu0 0.0
  %952 = vmatpush1.msra.mxu0 %v167
  %953 = vmatprep.subr.mxu0 0.0
  %954 = vmatpush1.msra.mxu0 %v168
  %955 = vmatprep.subr.mxu0 0.0
  %956 = vmatpush1.msra.mxu0 %v169
  %957 = vmatprep.subr.mxu0 0.0
  %958 = vmatpush1.msra.mxu0 0.0
  %959 = vmatprep.subr.mxu0 0.0
  %960 = vmatpush1.msra.mxu0 0.0
  %961 = vmatprep.subr.mxu0 0.0
  %962 = vmatpush1.msra.mxu0 0.0
  %963 = vmatprep.subr.mxu0 0.0
  %964 = vmatpush1.msra.mxu0 0.0
  %965 = vmatprep.subr.mxu0 0.0
  %966 = vmatpush1.msra.mxu0 0.0
  %967 = vmatprep.subr.mxu0 0.0
  %968 = vmatpush1.msra.mxu0 0.0
  %969 = vmatprep.subr.mxu0 0.0
  %970 = vmatpush1.msra.mxu0 0.0
  %971 = vmatprep.subr.mxu0 0.0
  %972 = vmatpush1.msra.mxu0 0.0
  %973 = vmatprep.subr.mxu0 0.0
  %974 = vmatpush1.msra.mxu0 0.0
  %975 = vmatprep.subr.mxu0 0.0
  %976 = vmatpush1.msra.mxu0 0.0
  %977 = vmatprep.subr.mxu0 0.0
  %978 = vmatpush1.msra.mxu0 0.0
  %979 = vmatprep.subr.mxu0 0.0
  %980 = vmatpush1.msra.mxu0 0.0
  %981 = vmatprep.subr.mxu0 0.0
  %982 = vmatpush1.msra.mxu0 0.0
  %983 = vmatprep.subr.mxu0 0.0
  %984 = vmatpush1.msra.mxu0 0.0
  %985 = vmatprep.subr.mxu0 0.0
  %986 = vmatpush1.msra.mxu0 0.0
  %987 = vmatprep.subr.mxu0 0.0
  %988 = vmatpush1.msra.mxu0 0.0
  %989 = vmatprep.mubr.f32.mxu0 0.0
  %990 = vmatmul.mubr.f32.gmra.mrb[0].mxu0 %v924
  %v991 = vpop.f32.mrb[0].mxu0
  %v992 = vadd.f32 0.0, %v991
  %v993 = vpop.f32.mrb[0].mxu0
  %994 = vdwg.mxu0
  %v995 = vmul.f32 %v992, 0.001953125
  %v996 = vmul.f32 %v995, %v995
  %v998 = vrot.slane %v996, 7
  %v1000 = vsub.f32 %v995, %v998
  %v1001 = vadd.f32 %v1000, 1e-05
  %v1002 = vrsqrt.pop %v1001
  %v1004 = vrot.slane %v1002, 7
  %v1006 = vmul.f32 %v153, %v1004
  %v1008 = vrot.slane %v1006, 2
  %v1010 = vmul.f32 %v995, %v1008
  %v1012 = vrot.slane %v1010, 5
  %v1014 = vsub.f32 %v153, %v1012
  %v1016 = vrot.slane %v1014, 2
  %v1018 = vsel %vm193, %v1008, %v1016
  %v1020 = vsel %vm283, %v1018, 0
  %1022 = vmatprep.subr.mxu0 0.0
  %1023 = vmatpush1.msra.mxu0 %v170
  %1024 = vmatprep.subr.mxu0 0.0
  %1025 = vmatpush1.msra.mxu0 0.0
  %1026 = vmatprep.subr.mxu0 0.0
  %1027 = vmatpush1.msra.mxu0 0.0
  %1028 = vmatprep.subr.mxu0 0.0
  %1029 = vmatpush1.msra.mxu0 0.0
  %1030 = vmatprep.subr.mxu0 0.0
  %1031 = vmatpush1.msra.mxu0 0.0
  %1032 = vmatprep.subr.mxu0 0.0
  %1033 = vmatpush1.msra.mxu0 0.0
  %1034 = vmatprep.subr.mxu0 0.0
  %1035 = vmatpush1.msra.mxu0 0.0
  %1036 = vmatprep.subr.mxu0 0.0
  %1037 = vmatpush1.msra.mxu0 0.0
  %1038 = vmatprep.subr.mxu0 0.0
  %1039 = vmatpush1.msra.mxu0 0.0
  %1040 = vmatprep.subr.mxu0 0.0
  %1041 = vmatpush1.msra.mxu0 0.0
  %1042 = vmatprep.subr.mxu0 0.0
  %1043 = vmatpush1.msra.mxu0 0.0
  %1044 = vmatprep.subr.mxu0 0.0
  %1045 = vmatpush1.msra.mxu0 0.0
  %1046 = vmatprep.subr.mxu0 0.0
  %1047 = vmatpush1.msra.mxu0 0.0
  %1048 = vmatprep.subr.mxu0 0.0
  %1049 = vmatpush1.msra.mxu0 0.0
  %1050 = vmatprep.subr.mxu0 0.0
  %1051 = vmatpush1.msra.mxu0 0.0
  %1052 = vmatprep.subr.mxu0 0.0
  %1053 = vmatpush1.msra.mxu0 0.0
  %1054 = vmatprep.subr.mxu0 0.0
  %1055 = vmatpush1.msra.mxu0 0.0
  %1056 = vmatprep.subr.mxu0 0.0
  %1057 = vmatpush1.msra.mxu0 0.0
  %1058 = vmatprep.subr.mxu0 0.0
  %1059 = vmatpush1.msra.mxu0 0.0
  %1060 = vmatprep.subr.mxu0 0.0
  %1061 = vmatpush1.msra.mxu0 0.0
  %1062 = vmatprep.subr.mxu0 0.0
  %1063 = vmatpush1.msra.mxu0 0.0
  %1064 = vmatprep.subr.mxu0 0.0
  %1065 = vmatpush1.msra.mxu0 0.0
  %1066 = vmatprep.subr.mxu0 0.0
  %1067 = vmatpush1.msra.mxu0 0.0
  %1068 = vmatprep.subr.mxu0 0.0
  %1069 = vmatpush1.msra.mxu0 0.0
  %1070 = vmatprep.subr.mxu0 0.0
  %1071 = vmatpush1.msra.mxu0 0.0
  %1072 = vmatprep.subr.mxu0 0.0
  %1073 = vmatpush1.msra.mxu0 0.0
  %1074 = vmatprep.subr.mxu0 0.0
  %1075 = vmatpush1.msra.mxu0 0.0
  %1076 = vmatprep.subr.mxu0 0.0
  %1077 = vmatpush1.msra.mxu0 0.0
  %1078 = vmatprep.subr.mxu0 0.0
  %1079 = vmatpush1.msra.mxu0 0.0
  %1080 = vmatprep.subr.mxu0 0.0
  %1081 = vmatpush1.msra.mxu0 0.0
  %1082 = vmatprep.subr.mxu0 0.0
  %1083 = vmatpush1.msra.mxu0 0.0
  %1084 = vmatprep.subr.mxu0 0.0
  %1085 = vmatpush1.msra.mxu0 0.0
  %1086 = vmatprep.mubr.f32.mxu0 0.0
  %1087 = vmatmul.mubr.f32.gmra.mrb[0].mxu0 %v1020
  %v1088 = vpop.f32.mrb[0].mxu0
  %v1089 = vadd.f32 0.0, %v1088
  %v1090 = vpop.f32.mrb[0].mxu0
  %1091 = vdwg.mxu0
  %v1092 = vlaneseq
  %v1093 = vshrl.u32 %v1092, 7
  %v1094 = vsub.s32 0, %v1093
  %v1095 = vrot.slane %v1089, %v1094
  %v1096 = vmul.f32 %v667, %v1095
  %v1097 = vmul.f32 %v668, %v1095
  %v1098 = vmul.f32 %v900, %v1095
  %v1099 = vmul.f32 %v901, %v1095
  %v1100 = vlaneseq
  %v1101 = vshrl.u32 %v1100, 7
  %v1102 = vsub.s32 1, %v1101
  %v1103 = vrot.slane %v1089, %v1102
  %v1104 = vadd.f32 %v1096, %v1103
  %v1105 = vadd.f32 %v1097, %v1103
  %v1106 = vadd.f32 %v1098, %v1103
  %v1107 = vadd.f32 %v1099, %v1103
  %v1108 = vmax.f32 %v1104, 0.0
  %v1109 = vmax.f32 %v1105, 0.0
  %v1110 = vmax.f32 %v1106, 0.0
  %v1111 = vmax.f32 %v1107, 0.0
  %1112 = vst [vmem:[%s6] sm:$0xff] %v1108
  %1113 = vst [vmem:[%s6 + $0x8] sm:$0xff] %v1109
  %1114 = vst [vmem:[%s6 + $0x10] sm:$0xff] %v1110
  %1115 = vst [vmem:[%s6 + $0x18] sm:$0xff] %v1111
  // Predicated region
  $region26: #{double_conv.1} parent=0 // pred_check
    _
  $region27: #{double_conv.1} parent=0 // pred_check_branch
    %1117 = sbr.rel (0) target = $region29
  $region28: #{double_conv.1} parent=0 // pred_region
    _
  $region29: #{double_conv.1} parent=0 // pred_fallthru
    _
  // Predicated region
  $region30: #{double_conv.1} parent=0 // pred_check
    _
  $region31: #{double_conv.1} parent=0 // pred_check_branch
    %1119 = sbr.rel (0) target = $region33
  $region32: #{double_conv.1} parent=0 // pred_region
    _
  $region33: #{double_conv.1} parent=0 // pred_fallthru
    _

</llo_original>
